<compile_context>
chip_gen: v7x
topology: tpu7x:2x2x1
jax: 0.10.0
libtpu: 0.0.40
codegen_flags: <defaults>
</compile_context>

<pallas_src>
import jax
import jax.numpy as jnp
from jax.experimental import pallas as pl
from jax.experimental.pallas import tpu as pltpu


# ----------------------------------------------------------------------------
# Fully fused forward kernel (single pallas_call for the whole model forward)
# ----------------------------------------------------------------------------
def fused_forward_kernel(tok_ref,      # VMEM (T*B, 1) int32, time-major rows
                         embw0_ref,    # VMEM (V, 8H) bf16  = emb @ [Wih0f|Wih0b]
                         b0_ref,       # VMEM (1, 8H) f32   = [b0f | b0b]
                         whh0_ref,     # VMEM (2H, 8H) bf16 block-diag [Whh0f, Whh0b]
                         wih1_ref,     # VMEM (2H, 8H) bf16 = [Wih1f | Wih1b]
                         b1_ref,       # VMEM (1, 8H) f32   = [b1f | b1b]
                         whh1f_ref,    # VMEM (H, 4H) bf16
                         fcw_ref,      # VMEM (2H, C) bf16
                         fcb_ref,      # VMEM (1, C) f32
                         out_ref,      # VMEM (B, C) f32
                         l0_scr):      # VMEM scratch (T*B, 2H) f32
    TB = tok_ref.shape[0]
    V = embw0_ref.shape[0]
    H = whh1f_ref.shape[0]
    H4 = 4 * H
    B = out_ref.shape[0]
    T = TB // B

    # ---- one-hot over the vocab (OOB id -> all-zero row, no OOB read) ----
    tok = tok_ref[...]                                          # (TB, 1) i32
    iota_v = jax.lax.broadcasted_iota(jnp.int32, (TB, V), 1)
    onehot = (iota_v == tok).astype(jnp.bfloat16)               # (TB, V)

    # ---- layer-0 input projections for ALL timesteps & both directions ----
    #   xw0[t*B+b, 0:4H]  = x(b,t) @ W_ih0f + b0f   (fwd gates)
    #   xw0[t*B+b, 4H:8H] = x(b,t) @ W_ih0b + b0b   (bwd gates)
    xw0 = (jnp.dot(onehot, embw0_ref[...],
                   preferred_element_type=jnp.float32)
           + b0_ref[...])                                       # (TB, 8H) f32

    whh0 = whh0_ref[...]                                        # hoisted load
    zeros_h = jnp.zeros((B, H), jnp.float32)

    def cell(gates, c):                 # PyTorch gate order i, f, g, o
        sig = jax.nn.sigmoid(gates)
        tnh = jnp.tanh(gates)
        i_g = sig[:, 0 * H:1 * H]
        f_g = sig[:, 1 * H:2 * H]
        g_g = tnh[:, 2 * H:3 * H]
        o_g = sig[:, 3 * H:4 * H]
        c_new = f_g * c + i_g * g_g
        h_new = o_g * jnp.tanh(c_new)
        return h_new, c_new

    # ---- layer 0: fwd & bwd recurrences fused (block-diagonal W_hh) ----
    h_f, c_f = zeros_h, zeros_h
    h_b, c_b = zeros_h, zeros_h
    for j in range(T):                  # static unroll, T is tiny
        tb = T - 1 - j                  # backward direction time index
        h_cat = jnp.concatenate([h_f, h_b], axis=-1).astype(jnp.bfloat16)
        rec = jnp.dot(h_cat, whh0,
                      preferred_element_type=jnp.float32)        # (B, 8H)
        gates_f = xw0[j * B:(j + 1) * B, 0:H4] + rec[:, 0:H4]
        gates_b = xw0[tb * B:(tb + 1) * B, H4:2 * H4] + rec[:, H4:2 * H4]
        h_f, c_f = cell(gates_f, c_f)
        h_b, c_b = cell(gates_b, c_b)
        l0_scr[j * B:(j + 1) * B, 0:H] = h_f
        l0_scr[tb * B:(tb + 1) * B, H:2 * H] = h_b

    # ---- layer-1 input projections for ALL timesteps & both directions ----
    l0_all = l0_scr[...].astype(jnp.bfloat16)                   # (TB, 2H)
    xw1 = (jnp.dot(l0_all, wih1_ref[...],
                   preferred_element_type=jnp.float32)
           + b1_ref[...])                                       # (TB, 8H)

    # ---- layer 1 forward: full recurrence, only the final h is needed ----
    whh1f = whh1f_ref[...]
    h1, c1 = zeros_h, zeros_h
    for t in range(T):
        rec = jnp.dot(h1.astype(jnp.bfloat16), whh1f,
                      preferred_element_type=jnp.float32)
        gates = xw1[t * B:(t + 1) * B, 0:H4] + rec
        h1, c1 = cell(gates, c1)

    # ---- layer 1 backward: out[:, -1, :] needs only ONE step from a zero
    # state (PyTorch bidirectional convention), so h @ W_hh == 0: no matmul.
    gates_b1 = xw1[(T - 1) * B:T * B, H4:2 * H4]
    h1b, _ = cell(gates_b1, zeros_h)

    # ---- classifier head: split matmul over the halves of fc_w (no concat) ----
    fcw = fcw_ref[...]
    out_ref[...] = (jnp.dot(h1.astype(jnp.bfloat16), fcw[0:H, :],
                            preferred_element_type=jnp.float32)
                    + jnp.dot(h1b.astype(jnp.bfloat16), fcw[H:2 * H, :],
                              preferred_element_type=jnp.float32)
                    + fcb_ref[...])


# ----------------------------------------------------------------------------
# Wrapper: fold/reshape weights, launch the single fused pallas_call
# ----------------------------------------------------------------------------
def fused_forward(tokens, params):
    B, T = tokens.shape
    emb = params["embedding"]                                   # (V, D)
    V = emb.shape[0]
    w_ih0f, w_hh0f, b0f = params["lstm"][0]["fwd"]
    w_ih0b, w_hh0b, b0b = params["lstm"][0]["bwd"]
    w_ih1f, w_hh1f, b1f = params["lstm"][1]["fwd"]
    w_ih1b, w_hh1b, b1b = params["lstm"][1]["bwd"]
    fc_w, fc_b = params["fc_w"], params["fc_b"]
    H = w_hh0f.shape[0]
    C = fc_w.shape[1]

    f32, bf16 = jnp.float32, jnp.bfloat16
    hp = jax.lax.Precision.HIGHEST      # one-time folds stay exact f32

    # Fold the embedding table into the layer-0 input projections.
    w_ih0_cat = jnp.concatenate([w_ih0f, w_ih0b], axis=1)       # (D, 8H)
    embw0 = jnp.dot(emb, w_ih0_cat, precision=hp).astype(bf16)  # (V, 8H)
    b0_cat = jnp.concatenate([b0f, b0b], axis=1).astype(f32)    # (1, 8H)

    # Block-diagonal layer-0 hidden->hidden weights: [h_f | h_b] @ blk.
    zH = jnp.zeros((H, 4 * H), f32)
    whh0_blk = jnp.concatenate(
        [jnp.concatenate([w_hh0f, zH], axis=1),
         jnp.concatenate([zH, w_hh0b], axis=1)], axis=0).astype(bf16)  # (2H, 8H)

    w_ih1_cat = jnp.concatenate([w_ih1f, w_ih1b], axis=1).astype(bf16)  # (2H, 8H)
    b1_cat = jnp.concatenate([b1f, b1b], axis=1).astype(f32)            # (1, 8H)

    whh1f_bf = w_hh1f.astype(bf16)
    fc_w_bf = fc_w.astype(bf16)
    fc_b_f = fc_b.astype(f32)

    # Time-major token ids (row = t*B + b), clamped to the vocab.
    tok_tm = jnp.clip(tokens.astype(jnp.int32), 0, V - 1).T.reshape(T * B, 1)

    tensor_inputs = [tok_tm, embw0, b0_cat, whh0_blk, w_ih1_cat, b1_cat,
                     whh1f_bf, fc_w_bf, fc_b_f]
    # Every array is small: full-array blocks, resident in VMEM for the call.
    in_specs = [pl.BlockSpec(a.shape, lambda i: (0, 0)) for a in tensor_inputs]

    return pl.pallas_call(
        fused_forward_kernel,
        out_shape=jax.ShapeDtypeStruct((B, C), f32),
        grid_spec=pltpu.PrefetchScalarGridSpec(
            num_scalar_prefetch=0,
            grid=(1,),
            in_specs=in_specs,
            out_specs=pl.BlockSpec((B, C), lambda i: (0, 0)),
            scratch_shapes=[pltpu.VMEM((T * B, 2 * H), f32)],   # layer-0 outputs
        ),
        compiler_params=pltpu.CompilerParams(
            dimension_semantics=("arbitrary",)),
    )(*tensor_inputs)


model_forward = jax.jit(fused_forward)


# ----------------------------------------------------------------------------
# Parameters (deterministic, synthetic — module __init__ only defines shapes)
# ----------------------------------------------------------------------------
def init_params(key, vocab_size, embed_dim, hidden, num_classes, num_layers=2):
    params = {}
    key, k_emb = jax.random.split(key)
    params["embedding"] = jax.random.normal(
        k_emb, (vocab_size, embed_dim), jnp.float32) * 0.1

    params["lstm"] = []
    for layer in range(num_layers):
        in_dim = embed_dim if layer == 0 else 2 * hidden
        layer_p = {}
        for direction in ("fwd", "bwd"):
            key, k1, k2, k3 = jax.random.split(key, 4)
            w_ih = jax.random.normal(k1, (in_dim, 4 * hidden), jnp.float32) * 0.05
            w_hh = jax.random.normal(k2, (hidden, 4 * hidden), jnp.float32) * 0.05
            b = jax.random.normal(k3, (1, 4 * hidden), jnp.float32) * 0.05
            layer_p[direction] = (w_ih, w_hh, b)
        params["lstm"].append(layer_p)

    key, kw, kb = jax.random.split(key, 3)
    params["fc_w"] = jax.random.normal(
        kw, (2 * hidden, num_classes), jnp.float32) * 0.05
    params["fc_b"] = jax.random.normal(kb, (1, num_classes), jnp.float32) * 0.05
    return params


# ----------------------------------------------------------------------------
# Pure-JAX reference (eval-mode PyTorch semantics, exact f32) for sanity check
# ----------------------------------------------------------------------------
def reference_forward(tokens, params):
    hp = jax.lax.Precision.HIGHEST
    x = jnp.take(params["embedding"], tokens, axis=0)          # (B, T, D)
    inp = x
    for layer_p in params["lstm"]:
        B, T, _ = inp.shape
        outs = []
        for direction, rev in (("fwd", False), ("bwd", True)):
            w_ih, w_hh, b = layer_p[direction]
            H = w_hh.shape[0]
            h = jnp.zeros((B, H), jnp.float32)
            c = jnp.zeros((B, H), jnp.float32)
            hs = [None] * T
            order = range(T - 1, -1, -1) if rev else range(T)
            for t in order:
                gates = (jnp.dot(inp[:, t, :], w_ih, precision=hp)
                         + jnp.dot(h, w_hh, precision=hp) + b)
                i_g = jax.nn.sigmoid(gates[:, 0 * H:1 * H])
                f_g = jax.nn.sigmoid(gates[:, 1 * H:2 * H])
                g_g = jnp.tanh(gates[:, 2 * H:3 * H])
                o_g = jax.nn.sigmoid(gates[:, 3 * H:4 * H])
                c = f_g * c + i_g * g_g
                h = o_g * jnp.tanh(c)
                hs[t] = h
            outs.append(jnp.stack(hs, axis=1))                  # (B, T, H)
        inp = jnp.concatenate(outs, axis=-1)                    # (B, T, 2H)
    last = inp[:, -1, :]
    return jnp.dot(last, params["fc_w"], precision=hp) + params["fc_b"]


if __name__ == "__main__":
    # Small shapes consistent with the module's forward:
    #   vocab=50, embed_dim = hidden_size = 32, rnn_hidden = 32,
    #   num_layers = 2 (bidirectional), num_classes = 10, batch=2, seq=8
    VOCAB, EMBED, HIDDEN, CLASSES = 50, 32, 32, 10
    BATCH, SEQ = 2, 8

    key = jax.random.PRNGKey(0)
    key, k_tok, k_par = jax.random.split(key, 3)

    tokens = jax.random.randint(k_tok, (BATCH, SEQ), 0, VOCAB, dtype=jnp.int32)
    params = init_params(k_par, VOCAB, EMBED, HIDDEN, CLASSES, num_layers=2)

    logits = model_forward(tokens, params)
    jax.block_until_ready(logits)
    assert logits.shape == (BATCH, CLASSES)
    assert logits.dtype == jnp.float32

    ref = reference_forward(tokens, params)
    max_err = jnp.max(jnp.abs(logits - ref))
    # Kernel matmuls run at bf16 (f32 accumulation); tolerance re-validated.
    assert jnp.allclose(logits, ref, atol=5e-3, rtol=5e-3), float(max_err)

    print("KERNEL_OK")
</pallas_src>

<mosaic_0001>
module attributes {stable_mosaic.version = 11 : i64} {
  func.func @fused_forward_kernel(%arg0: i32, %arg1: memref<16x1xi32, #tpu.memory_space<vmem>>, %arg2: memref<50x256xbf16, #tpu.memory_space<vmem>>, %arg3: memref<1x256xf32, #tpu.memory_space<vmem>>, %arg4: memref<64x256xbf16, #tpu.memory_space<vmem>>, %arg5: memref<64x256xbf16, #tpu.memory_space<vmem>>, %arg6: memref<1x256xf32, #tpu.memory_space<vmem>>, %arg7: memref<32x128xbf16, #tpu.memory_space<vmem>>, %arg8: memref<64x10xbf16, #tpu.memory_space<vmem>>, %arg9: memref<1x10xf32, #tpu.memory_space<vmem>>, %arg10: memref<2x10xf32, #tpu.memory_space<vmem>>, %arg11: memref<16x64xf32, #tpu.memory_space<vmem>>) attributes {dimension_semantics = [#tpu.dimension_semantics<arbitrary>], iteration_bounds = array<i64: 1>, scalar_prefetch = 0 : i64, scratch_operands = 1 : i64, tpu.core_type = #tpu.core_type<tc>, window_params = [{pipeline_mode = #tpu.pipeline_mode<synchronous>, transform_indices = @transform_0, window_bounds = array<i64: 16, 1>}, {pipeline_mode = #tpu.pipeline_mode<synchronous>, transform_indices = @transform_1, window_bounds = array<i64: 50, 256>}, {pipeline_mode = #tpu.pipeline_mode<synchronous>, transform_indices = @transform_2, window_bounds = array<i64: 1, 256>}, {pipeline_mode = #tpu.pipeline_mode<synchronous>, transform_indices = @transform_3, window_bounds = array<i64: 64, 256>}, {pipeline_mode = #tpu.pipeline_mode<synchronous>, transform_indices = @transform_4, window_bounds = array<i64: 64, 256>}, {pipeline_mode = #tpu.pipeline_mode<synchronous>, transform_indices = @transform_5, window_bounds = array<i64: 1, 256>}, {pipeline_mode = #tpu.pipeline_mode<synchronous>, transform_indices = @transform_6, window_bounds = array<i64: 32, 128>}, {pipeline_mode = #tpu.pipeline_mode<synchronous>, transform_indices = @transform_7, window_bounds = array<i64: 64, 10>}, {pipeline_mode = #tpu.pipeline_mode<synchronous>, transform_indices = @transform_8, window_bounds = array<i64: 1, 10>}, {pipeline_mode = #tpu.pipeline_mode<synchronous>, transform_indices = @transform_9, window_bounds = array<i64: 2, 10>}]} {
    %c0 = arith.constant 0 : index
    %c0_0 = arith.constant 0 : index
    %0 = vector.load %arg1[%c0, %c0_0] : memref<16x1xi32, #tpu.memory_space<vmem>>, vector<16x1xi32>
    %1 = tpu.iota {dimensions = array<i32: 1>} : vector<16x50xi32>
    %2 = vector.broadcast %0 : vector<16x1xi32> to vector<16x50xi32>
    %3 = arith.cmpi eq, %1, %2 : vector<16x50xi32>
    %4 = arith.extui %3 : vector<16x50xi1> to vector<16x50xi32>
    %5 = arith.sitofp %4 : vector<16x50xi32> to vector<16x50xf32>
    %6 = arith.truncf %5 : vector<16x50xf32> to vector<16x50xbf16>
    %c0_1 = arith.constant 0 : index
    %c0_2 = arith.constant 0 : index
    %7 = vector.load %arg2[%c0_1, %c0_2] : memref<50x256xbf16, #tpu.memory_space<vmem>>, vector<50x256xbf16>
    %cst = arith.constant dense<0.000000e+00> : vector<16x256xf32>
    %8 = tpu.matmul %6, %7, %cst {dimension_numbers = #tpu.dot_dimension_numbers<[1], [0], [0], [1], [0, 0, 1, 1], [], []>} : vector<16x50xbf16>, vector<50x256xbf16>, vector<16x256xf32> -> vector<16x256xf32>
    %c0_3 = arith.constant 0 : index
    %c0_4 = arith.constant 0 : index
    %9 = vector.load %arg3[%c0_3, %c0_4] : memref<1x256xf32, #tpu.memory_space<vmem>>, vector<1x256xf32>
    %10 = vector.broadcast %9 : vector<1x256xf32> to vector<16x256xf32>
    %11 = arith.addf %8, %10 : vector<16x256xf32>
    %c0_5 = arith.constant 0 : index
    %c0_6 = arith.constant 0 : index
    %12 = vector.load %arg4[%c0_5, %c0_6] : memref<64x256xbf16, #tpu.memory_space<vmem>>, vector<64x256xbf16>
    %cst_7 = arith.constant 0.000000e+00 : f32
    %13 = vector.broadcast %cst_7 : f32 to vector<2x32xf32>
    %14 = tpu.concatenate %13, %13 in 1 : vector<2x32xf32>, vector<2x32xf32> -> vector<2x64xf32>
    %15 = arith.truncf %14 : vector<2x64xf32> to vector<2x64xbf16>
    %cst_8 = arith.constant dense<0.000000e+00> : vector<2x256xf32>
    %16 = tpu.matmul %15, %12, %cst_8 {dimension_numbers = #tpu.dot_dimension_numbers<[1], [0], [0], [1], [0, 0, 1, 1], [], []>} : vector<2x64xbf16>, vector<64x256xbf16>, vector<2x256xf32> -> vector<2x256xf32>
    %17 = vector.extract_strided_slice %11 {offsets = [0, 0], sizes = [2, 128], strides = [1, 1]} : vector<16x256xf32> to vector<2x128xf32>
    %18 = vector.extract_strided_slice %16 {offsets = [0, 0], sizes = [2, 128], strides = [1, 1]} : vector<2x256xf32> to vector<2x128xf32>
    %19 = arith.addf %17, %18 : vector<2x128xf32>
    %20 = vector.extract_strided_slice %11 {offsets = [14, 128], sizes = [2, 128], strides = [1, 1]} : vector<16x256xf32> to vector<2x128xf32>
    %21 = vector.extract_strided_slice %16 {offsets = [0, 128], sizes = [2, 128], strides = [1, 1]} : vector<2x256xf32> to vector<2x128xf32>
    %22 = arith.addf %20, %21 : vector<2x128xf32>
    %23 = arith.negf %19 : vector<2x128xf32>
    %24 = math.exp %23 : vector<2x128xf32>
    %cst_9 = arith.constant 1.000000e+00 : f32
    %25 = vector.broadcast %cst_9 : f32 to vector<2x128xf32>
    %26 = arith.addf %25, %24 : vector<2x128xf32>
    %27 = arith.divf %25, %26 : vector<2x128xf32>
    %28 = math.tanh %19 : vector<2x128xf32>
    %29 = vector.extract_strided_slice %27 {offsets = [0, 0], sizes = [2, 32], strides = [1, 1]} : vector<2x128xf32> to vector<2x32xf32>
    %30 = vector.extract_strided_slice %27 {offsets = [0, 32], sizes = [2, 32], strides = [1, 1]} : vector<2x128xf32> to vector<2x32xf32>
    %31 = vector.extract_strided_slice %28 {offsets = [0, 64], sizes = [2, 32], strides = [1, 1]} : vector<2x128xf32> to vector<2x32xf32>
    %32 = vector.extract_strided_slice %27 {offsets = [0, 96], sizes = [2, 32], strides = [1, 1]} : vector<2x128xf32> to vector<2x32xf32>
    %33 = arith.mulf %30, %13 : vector<2x32xf32>
    %34 = arith.mulf %29, %31 : vector<2x32xf32>
    %35 = arith.addf %33, %34 : vector<2x32xf32>
    %36 = math.tanh %35 : vector<2x32xf32>
    %37 = arith.mulf %32, %36 : vector<2x32xf32>
    %38 = arith.negf %22 : vector<2x128xf32>
    %39 = math.exp %38 : vector<2x128xf32>
    %cst_10 = arith.constant 1.000000e+00 : f32
    %40 = vector.broadcast %cst_10 : f32 to vector<2x128xf32>
    %41 = arith.addf %40, %39 : vector<2x128xf32>
    %42 = arith.divf %40, %41 : vector<2x128xf32>
    %43 = math.tanh %22 : vector<2x128xf32>
    %44 = vector.extract_strided_slice %42 {offsets = [0, 0], sizes = [2, 32], strides = [1, 1]} : vector<2x128xf32> to vector<2x32xf32>
    %45 = vector.extract_strided_slice %42 {offsets = [0, 32], sizes = [2, 32], strides = [1, 1]} : vector<2x128xf32> to vector<2x32xf32>
    %46 = vector.extract_strided_slice %43 {offsets = [0, 64], sizes = [2, 32], strides = [1, 1]} : vector<2x128xf32> to vector<2x32xf32>
    %47 = vector.extract_strided_slice %42 {offsets = [0, 96], sizes = [2, 32], strides = [1, 1]} : vector<2x128xf32> to vector<2x32xf32>
    %48 = arith.mulf %45, %13 : vector<2x32xf32>
    %49 = arith.mulf %44, %46 : vector<2x32xf32>
    %50 = arith.addf %48, %49 : vector<2x32xf32>
    %51 = math.tanh %50 : vector<2x32xf32>
    %52 = arith.mulf %47, %51 : vector<2x32xf32>
    %c0_11 = arith.constant 0 : index
    %c0_12 = arith.constant 0 : index
    %53 = vector.load %arg11[%c0_11, %c0_12] : memref<16x64xf32, #tpu.memory_space<vmem>>, vector<2x32xf32>
    tpu.vector_store %arg11[%c0_11, %c0_12], %37 {strides = array<i32>} : memref<16x64xf32, #tpu.memory_space<vmem>>, vector<2x32xf32>,
    %c14 = arith.constant 14 : index
    %c32 = arith.constant 32 : index
    %54 = vector.load %arg11[%c14, %c32] : memref<16x64xf32, #tpu.memory_space<vmem>>, vector<2x32xf32>
    tpu.vector_store %arg11[%c14, %c32], %52 {strides = array<i32>} : memref<16x64xf32, #tpu.memory_space<vmem>>, vector<2x32xf32>,
    %55 = tpu.concatenate %37, %52 in 1 : vector<2x32xf32>, vector<2x32xf32> -> vector<2x64xf32>
    %56 = arith.truncf %55 : vector<2x64xf32> to vector<2x64xbf16>
    %cst_13 = arith.constant dense<0.000000e+00> : vector<2x256xf32>
    %57 = tpu.matmul %56, %12, %cst_13 {dimension_numbers = #tpu.dot_dimension_numbers<[1], [0], [0], [1], [0, 0, 1, 1], [], []>} : vector<2x64xbf16>, vector<64x256xbf16>, vector<2x256xf32> -> vector<2x256xf32>
    %58 = vector.extract_strided_slice %11 {offsets = [2, 0], sizes = [2, 128], strides = [1, 1]} : vector<16x256xf32> to vector<2x128xf32>
    %59 = vector.extract_strided_slice %57 {offsets = [0, 0], sizes = [2, 128], strides = [1, 1]} : vector<2x256xf32> to vector<2x128xf32>
    %60 = arith.addf %58, %59 : vector<2x128xf32>
    %61 = vector.extract_strided_slice %11 {offsets = [12, 128], sizes = [2, 128], strides = [1, 1]} : vector<16x256xf32> to vector<2x128xf32>
    %62 = vector.extract_strided_slice %57 {offsets = [0, 128], sizes = [2, 128], strides = [1, 1]} : vector<2x256xf32> to vector<2x128xf32>
    %63 = arith.addf %61, %62 : vector<2x128xf32>
    %64 = arith.negf %60 : vector<2x128xf32>
    %65 = math.exp %64 : vector<2x128xf32>
    %cst_14 = arith.constant 1.000000e+00 : f32
    %66 = vector.broadcast %cst_14 : f32 to vector<2x128xf32>
    %67 = arith.addf %66, %65 : vector<2x128xf32>
    %68 = arith.divf %66, %67 : vector<2x128xf32>
    %69 = math.tanh %60 : vector<2x128xf32>
    %70 = vector.extract_strided_slice %68 {offsets = [0, 0], sizes = [2, 32], strides = [1, 1]} : vector<2x128xf32> to vector<2x32xf32>
    %71 = vector.extract_strided_slice %68 {offsets = [0, 32], sizes = [2, 32], strides = [1, 1]} : vector<2x128xf32> to vector<2x32xf32>
    %72 = vector.extract_strided_slice %69 {offsets = [0, 64], sizes = [2, 32], strides = [1, 1]} : vector<2x128xf32> to vector<2x32xf32>
    %73 = vector.extract_strided_slice %68 {offsets = [0, 96], sizes = [2, 32], strides = [1, 1]} : vector<2x128xf32> to vector<2x32xf32>
    %74 = arith.mulf %71, %35 : vector<2x32xf32>
    %75 = arith.mulf %70, %72 : vector<2x32xf32>
    %76 = arith.addf %74, %75 : vector<2x32xf32>
    %77 = math.tanh %76 : vector<2x32xf32>
    %78 = arith.mulf %73, %77 : vector<2x32xf32>
    %79 = arith.negf %63 : vector<2x128xf32>
    %80 = math.exp %79 : vector<2x128xf32>
    %cst_15 = arith.constant 1.000000e+00 : f32
    %81 = vector.broadcast %cst_15 : f32 to vector<2x128xf32>
    %82 = arith.addf %81, %80 : vector<2x128xf32>
    %83 = arith.divf %81, %82 : vector<2x128xf32>
    %84 = math.tanh %63 : vector<2x128xf32>
    %85 = vector.extract_strided_slice %83 {offsets = [0, 0], sizes = [2, 32], strides = [1, 1]} : vector<2x128xf32> to vector<2x32xf32>
    %86 = vector.extract_strided_slice %83 {offsets = [0, 32], sizes = [2, 32], strides = [1, 1]} : vector<2x128xf32> to vector<2x32xf32>
    %87 = vector.extract_strided_slice %84 {offsets = [0, 64], sizes = [2, 32], strides = [1, 1]} : vector<2x128xf32> to vector<2x32xf32>
    %88 = vector.extract_strided_slice %83 {offsets = [0, 96], sizes = [2, 32], strides = [1, 1]} : vector<2x128xf32> to vector<2x32xf32>
    %89 = arith.mulf %86, %50 : vector<2x32xf32>
    %90 = arith.mulf %85, %87 : vector<2x32xf32>
    %91 = arith.addf %89, %90 : vector<2x32xf32>
    %92 = math.tanh %91 : vector<2x32xf32>
    %93 = arith.mulf %88, %92 : vector<2x32xf32>
    %c2 = arith.constant 2 : index
    %c0_16 = arith.constant 0 : index
    %94 = vector.load %arg11[%c2, %c0_16] : memref<16x64xf32, #tpu.memory_space<vmem>>, vector<2x32xf32>
    tpu.vector_store %arg11[%c2, %c0_16], %78 {strides = array<i32>} : memref<16x64xf32, #tpu.memory_space<vmem>>, vector<2x32xf32>,
    %c12 = arith.constant 12 : index
    %c32_17 = arith.constant 32 : index
    %95 = vector.load %arg11[%c12, %c32_17] : memref<16x64xf32, #tpu.memory_space<vmem>>, vector<2x32xf32>
    tpu.vector_store %arg11[%c12, %c32_17], %93 {strides = array<i32>} : memref<16x64xf32, #tpu.memory_space<vmem>>, vector<2x32xf32>,
    %96 = tpu.concatenate %78, %93 in 1 : vector<2x32xf32>, vector<2x32xf32> -> vector<2x64xf32>
    %97 = arith.truncf %96 : vector<2x64xf32> to vector<2x64xbf16>
    %cst_18 = arith.constant dense<0.000000e+00> : vector<2x256xf32>
    %98 = tpu.matmul %97, %12, %cst_18 {dimension_numbers = #tpu.dot_dimension_numbers<[1], [0], [0], [1], [0, 0, 1, 1], [], []>} : vector<2x64xbf16>, vector<64x256xbf16>, vector<2x256xf32> -> vector<2x256xf32>
    %99 = vector.extract_strided_slice %11 {offsets = [4, 0], sizes = [2, 128], strides = [1, 1]} : vector<16x256xf32> to vector<2x128xf32>
    %100 = vector.extract_strided_slice %98 {offsets = [0, 0], sizes = [2, 128], strides = [1, 1]} : vector<2x256xf32> to vector<2x128xf32>
    %101 = arith.addf %99, %100 : vector<2x128xf32>
    %102 = vector.extract_strided_slice %11 {offsets = [10, 128], sizes = [2, 128], strides = [1, 1]} : vector<16x256xf32> to vector<2x128xf32>
    %103 = vector.extract_strided_slice %98 {offsets = [0, 128], sizes = [2, 128], strides = [1, 1]} : vector<2x256xf32> to vector<2x128xf32>
    %104 = arith.addf %102, %103 : vector<2x128xf32>
    %105 = arith.negf %101 : vector<2x128xf32>
    %106 = math.exp %105 : vector<2x128xf32>
    %cst_19 = arith.constant 1.000000e+00 : f32
    %107 = vector.broadcast %cst_19 : f32 to vector<2x128xf32>
    %108 = arith.addf %107, %106 : vector<2x128xf32>
    %109 = arith.divf %107, %108 : vector<2x128xf32>
    %110 = math.tanh %101 : vector<2x128xf32>
    %111 = vector.extract_strided_slice %109 {offsets = [0, 0], sizes = [2, 32], strides = [1, 1]} : vector<2x128xf32> to vector<2x32xf32>
    %112 = vector.extract_strided_slice %109 {offsets = [0, 32], sizes = [2, 32], strides = [1, 1]} : vector<2x128xf32> to vector<2x32xf32>
    %113 = vector.extract_strided_slice %110 {offsets = [0, 64], sizes = [2, 32], strides = [1, 1]} : vector<2x128xf32> to vector<2x32xf32>
    %114 = vector.extract_strided_slice %109 {offsets = [0, 96], sizes = [2, 32], strides = [1, 1]} : vector<2x128xf32> to vector<2x32xf32>
    %115 = arith.mulf %112, %76 : vector<2x32xf32>
    %116 = arith.mulf %111, %113 : vector<2x32xf32>
    %117 = arith.addf %115, %116 : vector<2x32xf32>
    %118 = math.tanh %117 : vector<2x32xf32>
    %119 = arith.mulf %114, %118 : vector<2x32xf32>
    %120 = arith.negf %104 : vector<2x128xf32>
    %121 = math.exp %120 : vector<2x128xf32>
    %cst_20 = arith.constant 1.000000e+00 : f32
    %122 = vector.broadcast %cst_20 : f32 to vector<2x128xf32>
    %123 = arith.addf %122, %121 : vector<2x128xf32>
    %124 = arith.divf %122, %123 : vector<2x128xf32>
    %125 = math.tanh %104 : vector<2x128xf32>
    %126 = vector.extract_strided_slice %124 {offsets = [0, 0], sizes = [2, 32], strides = [1, 1]} : vector<2x128xf32> to vector<2x32xf32>
    %127 = vector.extract_strided_slice %124 {offsets = [0, 32], sizes = [2, 32], strides = [1, 1]} : vector<2x128xf32> to vector<2x32xf32>
    %128 = vector.extract_strided_slice %125 {offsets = [0, 64], sizes = [2, 32], strides = [1, 1]} : vector<2x128xf32> to vector<2x32xf32>
    %129 = vector.extract_strided_slice %124 {offsets = [0, 96], sizes = [2, 32], strides = [1, 1]} : vector<2x128xf32> to vector<2x32xf32>
    %130 = arith.mulf %127, %91 : vector<2x32xf32>
    %131 = arith.mulf %126, %128 : vector<2x32xf32>
    %132 = arith.addf %130, %131 : vector<2x32xf32>
    %133 = math.tanh %132 : vector<2x32xf32>
    %134 = arith.mulf %129, %133 : vector<2x32xf32>
    %c4 = arith.constant 4 : index
    %c0_21 = arith.constant 0 : index
    %135 = vector.load %arg11[%c4, %c0_21] : memref<16x64xf32, #tpu.memory_space<vmem>>, vector<2x32xf32>
    tpu.vector_store %arg11[%c4, %c0_21], %119 {strides = array<i32>} : memref<16x64xf32, #tpu.memory_space<vmem>>, vector<2x32xf32>,
    %c10 = arith.constant 10 : index
    %c32_22 = arith.constant 32 : index
    %136 = vector.load %arg11[%c10, %c32_22] : memref<16x64xf32, #tpu.memory_space<vmem>>, vector<2x32xf32>
    tpu.vector_store %arg11[%c10, %c32_22], %134 {strides = array<i32>} : memref<16x64xf32, #tpu.memory_space<vmem>>, vector<2x32xf32>,
    %137 = tpu.concatenate %119, %134 in 1 : vector<2x32xf32>, vector<2x32xf32> -> vector<2x64xf32>
    %138 = arith.truncf %137 : vector<2x64xf32> to vector<2x64xbf16>
    %cst_23 = arith.constant dense<0.000000e+00> : vector<2x256xf32>
    %139 = tpu.matmul %138, %12, %cst_23 {dimension_numbers = #tpu.dot_dimension_numbers<[1], [0], [0], [1], [0, 0, 1, 1], [], []>} : vector<2x64xbf16>, vector<64x256xbf16>, vector<2x256xf32> -> vector<2x256xf32>
    %140 = vector.extract_strided_slice %11 {offsets = [6, 0], sizes = [2, 128], strides = [1, 1]} : vector<16x256xf32> to vector<2x128xf32>
    %141 = vector.extract_strided_slice %139 {offsets = [0, 0], sizes = [2, 128], strides = [1, 1]} : vector<2x256xf32> to vector<2x128xf32>
    %142 = arith.addf %140, %141 : vector<2x128xf32>
    %143 = vector.extract_strided_slice %11 {offsets = [8, 128], sizes = [2, 128], strides = [1, 1]} : vector<16x256xf32> to vector<2x128xf32>
    %144 = vector.extract_strided_slice %139 {offsets = [0, 128], sizes = [2, 128], strides = [1, 1]} : vector<2x256xf32> to vector<2x128xf32>
    %145 = arith.addf %143, %144 : vector<2x128xf32>
    %146 = arith.negf %142 : vector<2x128xf32>
    %147 = math.exp %146 : vector<2x128xf32>
    %cst_24 = arith.constant 1.000000e+00 : f32
    %148 = vector.broadcast %cst_24 : f32 to vector<2x128xf32>
    %149 = arith.addf %148, %147 : vector<2x128xf32>
    %150 = arith.divf %148, %149 : vector<2x128xf32>
    %151 = math.tanh %142 : vector<2x128xf32>
    %152 = vector.extract_strided_slice %150 {offsets = [0, 0], sizes = [2, 32], strides = [1, 1]} : vector<2x128xf32> to vector<2x32xf32>
    %153 = vector.extract_strided_slice %150 {offsets = [0, 32], sizes = [2, 32], strides = [1, 1]} : vector<2x128xf32> to vector<2x32xf32>
    %154 = vector.extract_strided_slice %151 {offsets = [0, 64], sizes = [2, 32], strides = [1, 1]} : vector<2x128xf32> to vector<2x32xf32>
    %155 = vector.extract_strided_slice %150 {offsets = [0, 96], sizes = [2, 32], strides = [1, 1]} : vector<2x128xf32> to vector<2x32xf32>
    %156 = arith.mulf %153, %117 : vector<2x32xf32>
    %157 = arith.mulf %152, %154 : vector<2x32xf32>
    %158 = arith.addf %156, %157 : vector<2x32xf32>
    %159 = math.tanh %158 : vector<2x32xf32>
    %160 = arith.mulf %155, %159 : vector<2x32xf32>
    %161 = arith.negf %145 : vector<2x128xf32>
    %162 = math.exp %161 : vector<2x128xf32>
    %cst_25 = arith.constant 1.000000e+00 : f32
    %163 = vector.broadcast %cst_25 : f32 to vector<2x128xf32>
    %164 = arith.addf %163, %162 : vector<2x128xf32>
    %165 = arith.divf %163, %164 : vector<2x128xf32>
    %166 = math.tanh %145 : vector<2x128xf32>
    %167 = vector.extract_strided_slice %165 {offsets = [0, 0], sizes = [2, 32], strides = [1, 1]} : vector<2x128xf32> to vector<2x32xf32>
    %168 = vector.extract_strided_slice %165 {offsets = [0, 32], sizes = [2, 32], strides = [1, 1]} : vector<2x128xf32> to vector<2x32xf32>
    %169 = vector.extract_strided_slice %166 {offsets = [0, 64], sizes = [2, 32], strides = [1, 1]} : vector<2x128xf32> to vector<2x32xf32>
    %170 = vector.extract_strided_slice %165 {offsets = [0, 96], sizes = [2, 32], strides = [1, 1]} : vector<2x128xf32> to vector<2x32xf32>
    %171 = arith.mulf %168, %132 : vector<2x32xf32>
    %172 = arith.mulf %167, %169 : vector<2x32xf32>
    %173 = arith.addf %171, %172 : vector<2x32xf32>
    %174 = math.tanh %173 : vector<2x32xf32>
    %175 = arith.mulf %170, %174 : vector<2x32xf32>
    %c6 = arith.constant 6 : index
    %c0_26 = arith.constant 0 : index
    %176 = vector.load %arg11[%c6, %c0_26] : memref<16x64xf32, #tpu.memory_space<vmem>>, vector<2x32xf32>
    tpu.vector_store %arg11[%c6, %c0_26], %160 {strides = array<i32>} : memref<16x64xf32, #tpu.memory_space<vmem>>, vector<2x32xf32>,
    %c8 = arith.constant 8 : index
    %c32_27 = arith.constant 32 : index
    %177 = vector.load %arg11[%c8, %c32_27] : memref<16x64xf32, #tpu.memory_space<vmem>>, vector<2x32xf32>
    tpu.vector_store %arg11[%c8, %c32_27], %175 {strides = array<i32>} : memref<16x64xf32, #tpu.memory_space<vmem>>, vector<2x32xf32>,
    %178 = tpu.concatenate %160, %175 in 1 : vector<2x32xf32>, vector<2x32xf32> -> vector<2x64xf32>
    %179 = arith.truncf %178 : vector<2x64xf32> to vector<2x64xbf16>
    %cst_28 = arith.constant dense<0.000000e+00> : vector<2x256xf32>
    %180 = tpu.matmul %179, %12, %cst_28 {dimension_numbers = #tpu.dot_dimension_numbers<[1], [0], [0], [1], [0, 0, 1, 1], [], []>} : vector<2x64xbf16>, vector<64x256xbf16>, vector<2x256xf32> -> vector<2x256xf32>
    %181 = vector.extract_strided_slice %11 {offsets = [8, 0], sizes = [2, 128], strides = [1, 1]} : vector<16x256xf32> to vector<2x128xf32>
    %182 = vector.extract_strided_slice %180 {offsets = [0, 0], sizes = [2, 128], strides = [1, 1]} : vector<2x256xf32> to vector<2x128xf32>
    %183 = arith.addf %181, %182 : vector<2x128xf32>
    %184 = vector.extract_strided_slice %11 {offsets = [6, 128], sizes = [2, 128], strides = [1, 1]} : vector<16x256xf32> to vector<2x128xf32>
    %185 = vector.extract_strided_slice %180 {offsets = [0, 128], sizes = [2, 128], strides = [1, 1]} : vector<2x256xf32> to vector<2x128xf32>
    %186 = arith.addf %184, %185 : vector<2x128xf32>
    %187 = arith.negf %183 : vector<2x128xf32>
    %188 = math.exp %187 : vector<2x128xf32>
    %cst_29 = arith.constant 1.000000e+00 : f32
    %189 = vector.broadcast %cst_29 : f32 to vector<2x128xf32>
    %190 = arith.addf %189, %188 : vector<2x128xf32>
    %191 = arith.divf %189, %190 : vector<2x128xf32>
    %192 = math.tanh %183 : vector<2x128xf32>
    %193 = vector.extract_strided_slice %191 {offsets = [0, 0], sizes = [2, 32], strides = [1, 1]} : vector<2x128xf32> to vector<2x32xf32>
    %194 = vector.extract_strided_slice %191 {offsets = [0, 32], sizes = [2, 32], strides = [1, 1]} : vector<2x128xf32> to vector<2x32xf32>
    %195 = vector.extract_strided_slice %192 {offsets = [0, 64], sizes = [2, 32], strides = [1, 1]} : vector<2x128xf32> to vector<2x32xf32>
    %196 = vector.extract_strided_slice %191 {offsets = [0, 96], sizes = [2, 32], strides = [1, 1]} : vector<2x128xf32> to vector<2x32xf32>
    %197 = arith.mulf %194, %158 : vector<2x32xf32>
    %198 = arith.mulf %193, %195 : vector<2x32xf32>
    %199 = arith.addf %197, %198 : vector<2x32xf32>
    %200 = math.tanh %199 : vector<2x32xf32>
    %201 = arith.mulf %196, %200 : vector<2x32xf32>
    %202 = arith.negf %186 : vector<2x128xf32>
    %203 = math.exp %202 : vector<2x128xf32>
    %cst_30 = arith.constant 1.000000e+00 : f32
    %204 = vector.broadcast %cst_30 : f32 to vector<2x128xf32>
    %205 = arith.addf %204, %203 : vector<2x128xf32>
    %206 = arith.divf %204, %205 : vector<2x128xf32>
    %207 = math.tanh %186 : vector<2x128xf32>
    %208 = vector.extract_strided_slice %206 {offsets = [0, 0], sizes = [2, 32], strides = [1, 1]} : vector<2x128xf32> to vector<2x32xf32>
    %209 = vector.extract_strided_slice %206 {offsets = [0, 32], sizes = [2, 32], strides = [1, 1]} : vector<2x128xf32> to vector<2x32xf32>
    %210 = vector.extract_strided_slice %207 {offsets = [0, 64], sizes = [2, 32], strides = [1, 1]} : vector<2x128xf32> to vector<2x32xf32>
    %211 = vector.extract_strided_slice %206 {offsets = [0, 96], sizes = [2, 32], strides = [1, 1]} : vector<2x128xf32> to vector<2x32xf32>
    %212 = arith.mulf %209, %173 : vector<2x32xf32>
    %213 = arith.mulf %208, %210 : vector<2x32xf32>
    %214 = arith.addf %212, %213 : vector<2x32xf32>
    %215 = math.tanh %214 : vector<2x32xf32>
    %216 = arith.mulf %211, %215 : vector<2x32xf32>
    %c8_31 = arith.constant 8 : index
    %c0_32 = arith.constant 0 : index
    %217 = vector.load %arg11[%c8_31, %c0_32] : memref<16x64xf32, #tpu.memory_space<vmem>>, vector<2x32xf32>
    tpu.vector_store %arg11[%c8_31, %c0_32], %201 {strides = array<i32>} : memref<16x64xf32, #tpu.memory_space<vmem>>, vector<2x32xf32>,
    %c6_33 = arith.constant 6 : index
    %c32_34 = arith.constant 32 : index
    %218 = vector.load %arg11[%c6_33, %c32_34] : memref<16x64xf32, #tpu.memory_space<vmem>>, vector<2x32xf32>
    tpu.vector_store %arg11[%c6_33, %c32_34], %216 {strides = array<i32>} : memref<16x64xf32, #tpu.memory_space<vmem>>, vector<2x32xf32>,
    %219 = tpu.concatenate %201, %216 in 1 : vector<2x32xf32>, vector<2x32xf32> -> vector<2x64xf32>
    %220 = arith.truncf %219 : vector<2x64xf32> to vector<2x64xbf16>
    %cst_35 = arith.constant dense<0.000000e+00> : vector<2x256xf32>
    %221 = tpu.matmul %220, %12, %cst_35 {dimension_numbers = #tpu.dot_dimension_numbers<[1], [0], [0], [1], [0, 0, 1, 1], [], []>} : vector<2x64xbf16>, vector<64x256xbf16>, vector<2x256xf32> -> vector<2x256xf32>
    %222 = vector.extract_strided_slice %11 {offsets = [10, 0], sizes = [2, 128], strides = [1, 1]} : vector<16x256xf32> to vector<2x128xf32>
    %223 = vector.extract_strided_slice %221 {offsets = [0, 0], sizes = [2, 128], strides = [1, 1]} : vector<2x256xf32> to vector<2x128xf32>
    %224 = arith.addf %222, %223 : vector<2x128xf32>
    %225 = vector.extract_strided_slice %11 {offsets = [4, 128], sizes = [2, 128], strides = [1, 1]} : vector<16x256xf32> to vector<2x128xf32>
    %226 = vector.extract_strided_slice %221 {offsets = [0, 128], sizes = [2, 128], strides = [1, 1]} : vector<2x256xf32> to vector<2x128xf32>
    %227 = arith.addf %225, %226 : vector<2x128xf32>
    %228 = arith.negf %224 : vector<2x128xf32>
    %229 = math.exp %228 : vector<2x128xf32>
    %cst_36 = arith.constant 1.000000e+00 : f32
    %230 = vector.broadcast %cst_36 : f32 to vector<2x128xf32>
    %231 = arith.addf %230, %229 : vector<2x128xf32>
    %232 = arith.divf %230, %231 : vector<2x128xf32>
    %233 = math.tanh %224 : vector<2x128xf32>
    %234 = vector.extract_strided_slice %232 {offsets = [0, 0], sizes = [2, 32], strides = [1, 1]} : vector<2x128xf32> to vector<2x32xf32>
    %235 = vector.extract_strided_slice %232 {offsets = [0, 32], sizes = [2, 32], strides = [1, 1]} : vector<2x128xf32> to vector<2x32xf32>
    %236 = vector.extract_strided_slice %233 {offsets = [0, 64], sizes = [2, 32], strides = [1, 1]} : vector<2x128xf32> to vector<2x32xf32>
    %237 = vector.extract_strided_slice %232 {offsets = [0, 96], sizes = [2, 32], strides = [1, 1]} : vector<2x128xf32> to vector<2x32xf32>
    %238 = arith.mulf %235, %199 : vector<2x32xf32>
    %239 = arith.mulf %234, %236 : vector<2x32xf32>
    %240 = arith.addf %238, %239 : vector<2x32xf32>
    %241 = math.tanh %240 : vector<2x32xf32>
    %242 = arith.mulf %237, %241 : vector<2x32xf32>
    %243 = arith.negf %227 : vector<2x128xf32>
    %244 = math.exp %243 : vector<2x128xf32>
    %cst_37 = arith.constant 1.000000e+00 : f32
    %245 = vector.broadcast %cst_37 : f32 to vector<2x128xf32>
    %246 = arith.addf %245, %244 : vector<2x128xf32>
    %247 = arith.divf %245, %246 : vector<2x128xf32>
    %248 = math.tanh %227 : vector<2x128xf32>
    %249 = vector.extract_strided_slice %247 {offsets = [0, 0], sizes = [2, 32], strides = [1, 1]} : vector<2x128xf32> to vector<2x32xf32>
    %250 = vector.extract_strided_slice %247 {offsets = [0, 32], sizes = [2, 32], strides = [1, 1]} : vector<2x128xf32> to vector<2x32xf32>
    %251 = vector.extract_strided_slice %248 {offsets = [0, 64], sizes = [2, 32], strides = [1, 1]} : vector<2x128xf32> to vector<2x32xf32>
    %252 = vector.extract_strided_slice %247 {offsets = [0, 96], sizes = [2, 32], strides = [1, 1]} : vector<2x128xf32> to vector<2x32xf32>
    %253 = arith.mulf %250, %214 : vector<2x32xf32>
    %254 = arith.mulf %249, %251 : vector<2x32xf32>
    %255 = arith.addf %253, %254 : vector<2x32xf32>
    %256 = math.tanh %255 : vector<2x32xf32>
    %257 = arith.mulf %252, %256 : vector<2x32xf32>
    %c10_38 = arith.constant 10 : index
    %c0_39 = arith.constant 0 : index
    %258 = vector.load %arg11[%c10_38, %c0_39] : memref<16x64xf32, #tpu.memory_space<vmem>>, vector<2x32xf32>
    tpu.vector_store %arg11[%c10_38, %c0_39], %242 {strides = array<i32>} : memref<16x64xf32, #tpu.memory_space<vmem>>, vector<2x32xf32>,
    %c4_40 = arith.constant 4 : index
    %c32_41 = arith.constant 32 : index
    %259 = vector.load %arg11[%c4_40, %c32_41] : memref<16x64xf32, #tpu.memory_space<vmem>>, vector<2x32xf32>
    tpu.vector_store %arg11[%c4_40, %c32_41], %257 {strides = array<i32>} : memref<16x64xf32, #tpu.memory_space<vmem>>, vector<2x32xf32>,
    %260 = tpu.concatenate %242, %257 in 1 : vector<2x32xf32>, vector<2x32xf32> -> vector<2x64xf32>
    %261 = arith.truncf %260 : vector<2x64xf32> to vector<2x64xbf16>
    %cst_42 = arith.constant dense<0.000000e+00> : vector<2x256xf32>
    %262 = tpu.matmul %261, %12, %cst_42 {dimension_numbers = #tpu.dot_dimension_numbers<[1], [0], [0], [1], [0, 0, 1, 1], [], []>} : vector<2x64xbf16>, vector<64x256xbf16>, vector<2x256xf32> -> vector<2x256xf32>
    %263 = vector.extract_strided_slice %11 {offsets = [12, 0], sizes = [2, 128], strides = [1, 1]} : vector<16x256xf32> to vector<2x128xf32>
    %264 = vector.extract_strided_slice %262 {offsets = [0, 0], sizes = [2, 128], strides = [1, 1]} : vector<2x256xf32> to vector<2x128xf32>
    %265 = arith.addf %263, %264 : vector<2x128xf32>
    %266 = vector.extract_strided_slice %11 {offsets = [2, 128], sizes = [2, 128], strides = [1, 1]} : vector<16x256xf32> to vector<2x128xf32>
    %267 = vector.extract_strided_slice %262 {offsets = [0, 128], sizes = [2, 128], strides = [1, 1]} : vector<2x256xf32> to vector<2x128xf32>
    %268 = arith.addf %266, %267 : vector<2x128xf32>
    %269 = arith.negf %265 : vector<2x128xf32>
    %270 = math.exp %269 : vector<2x128xf32>
    %cst_43 = arith.constant 1.000000e+00 : f32
    %271 = vector.broadcast %cst_43 : f32 to vector<2x128xf32>
    %272 = arith.addf %271, %270 : vector<2x128xf32>
    %273 = arith.divf %271, %272 : vector<2x128xf32>
    %274 = math.tanh %265 : vector<2x128xf32>
    %275 = vector.extract_strided_slice %273 {offsets = [0, 0], sizes = [2, 32], strides = [1, 1]} : vector<2x128xf32> to vector<2x32xf32>
    %276 = vector.extract_strided_slice %273 {offsets = [0, 32], sizes = [2, 32], strides = [1, 1]} : vector<2x128xf32> to vector<2x32xf32>
    %277 = vector.extract_strided_slice %274 {offsets = [0, 64], sizes = [2, 32], strides = [1, 1]} : vector<2x128xf32> to vector<2x32xf32>
    %278 = vector.extract_strided_slice %273 {offsets = [0, 96], sizes = [2, 32], strides = [1, 1]} : vector<2x128xf32> to vector<2x32xf32>
    %279 = arith.mulf %276, %240 : vector<2x32xf32>
    %280 = arith.mulf %275, %277 : vector<2x32xf32>
    %281 = arith.addf %279, %280 : vector<2x32xf32>
    %282 = math.tanh %281 : vector<2x32xf32>
    %283 = arith.mulf %278, %282 : vector<2x32xf32>
    %284 = arith.negf %268 : vector<2x128xf32>
    %285 = math.exp %284 : vector<2x128xf32>
    %cst_44 = arith.constant 1.000000e+00 : f32
    %286 = vector.broadcast %cst_44 : f32 to vector<2x128xf32>
    %287 = arith.addf %286, %285 : vector<2x128xf32>
    %288 = arith.divf %286, %287 : vector<2x128xf32>
    %289 = math.tanh %268 : vector<2x128xf32>
    %290 = vector.extract_strided_slice %288 {offsets = [0, 0], sizes = [2, 32], strides = [1, 1]} : vector<2x128xf32> to vector<2x32xf32>
    %291 = vector.extract_strided_slice %288 {offsets = [0, 32], sizes = [2, 32], strides = [1, 1]} : vector<2x128xf32> to vector<2x32xf32>
    %292 = vector.extract_strided_slice %289 {offsets = [0, 64], sizes = [2, 32], strides = [1, 1]} : vector<2x128xf32> to vector<2x32xf32>
    %293 = vector.extract_strided_slice %288 {offsets = [0, 96], sizes = [2, 32], strides = [1, 1]} : vector<2x128xf32> to vector<2x32xf32>
    %294 = arith.mulf %291, %255 : vector<2x32xf32>
    %295 = arith.mulf %290, %292 : vector<2x32xf32>
    %296 = arith.addf %294, %295 : vector<2x32xf32>
    %297 = math.tanh %296 : vector<2x32xf32>
    %298 = arith.mulf %293, %297 : vector<2x32xf32>
    %c12_45 = arith.constant 12 : index
    %c0_46 = arith.constant 0 : index
    %299 = vector.load %arg11[%c12_45, %c0_46] : memref<16x64xf32, #tpu.memory_space<vmem>>, vector<2x32xf32>
    tpu.vector_store %arg11[%c12_45, %c0_46], %283 {strides = array<i32>} : memref<16x64xf32, #tpu.memory_space<vmem>>, vector<2x32xf32>,
    %c2_47 = arith.constant 2 : index
    %c32_48 = arith.constant 32 : index
    %300 = vector.load %arg11[%c2_47, %c32_48] : memref<16x64xf32, #tpu.memory_space<vmem>>, vector<2x32xf32>
    tpu.vector_store %arg11[%c2_47, %c32_48], %298 {strides = array<i32>} : memref<16x64xf32, #tpu.memory_space<vmem>>, vector<2x32xf32>,
    %301 = tpu.concatenate %283, %298 in 1 : vector<2x32xf32>, vector<2x32xf32> -> vector<2x64xf32>
    %302 = arith.truncf %301 : vector<2x64xf32> to vector<2x64xbf16>
    %cst_49 = arith.constant dense<0.000000e+00> : vector<2x256xf32>
    %303 = tpu.matmul %302, %12, %cst_49 {dimension_numbers = #tpu.dot_dimension_numbers<[1], [0], [0], [1], [0, 0, 1, 1], [], []>} : vector<2x64xbf16>, vector<64x256xbf16>, vector<2x256xf32> -> vector<2x256xf32>
    %304 = vector.extract_strided_slice %11 {offsets = [14, 0], sizes = [2, 128], strides = [1, 1]} : vector<16x256xf32> to vector<2x128xf32>
    %305 = vector.extract_strided_slice %303 {offsets = [0, 0], sizes = [2, 128], strides = [1, 1]} : vector<2x256xf32> to vector<2x128xf32>
    %306 = arith.addf %304, %305 : vector<2x128xf32>
    %307 = vector.extract_strided_slice %11 {offsets = [0, 128], sizes = [2, 128], strides = [1, 1]} : vector<16x256xf32> to vector<2x128xf32>
    %308 = vector.extract_strided_slice %303 {offsets = [0, 128], sizes = [2, 128], strides = [1, 1]} : vector<2x256xf32> to vector<2x128xf32>
    %309 = arith.addf %307, %308 : vector<2x128xf32>
    %310 = arith.negf %306 : vector<2x128xf32>
    %311 = math.exp %310 : vector<2x128xf32>
    %cst_50 = arith.constant 1.000000e+00 : f32
    %312 = vector.broadcast %cst_50 : f32 to vector<2x128xf32>
    %313 = arith.addf %312, %311 : vector<2x128xf32>
    %314 = arith.divf %312, %313 : vector<2x128xf32>
    %315 = math.tanh %306 : vector<2x128xf32>
    %316 = vector.extract_strided_slice %314 {offsets = [0, 0], sizes = [2, 32], strides = [1, 1]} : vector<2x128xf32> to vector<2x32xf32>
    %317 = vector.extract_strided_slice %314 {offsets = [0, 32], sizes = [2, 32], strides = [1, 1]} : vector<2x128xf32> to vector<2x32xf32>
    %318 = vector.extract_strided_slice %315 {offsets = [0, 64], sizes = [2, 32], strides = [1, 1]} : vector<2x128xf32> to vector<2x32xf32>
    %319 = vector.extract_strided_slice %314 {offsets = [0, 96], sizes = [2, 32], strides = [1, 1]} : vector<2x128xf32> to vector<2x32xf32>
    %320 = arith.mulf %317, %281 : vector<2x32xf32>
    %321 = arith.mulf %316, %318 : vector<2x32xf32>
    %322 = arith.addf %320, %321 : vector<2x32xf32>
    %323 = math.tanh %322 : vector<2x32xf32>
    %324 = arith.mulf %319, %323 : vector<2x32xf32>
    %325 = arith.negf %309 : vector<2x128xf32>
    %326 = math.exp %325 : vector<2x128xf32>
    %cst_51 = arith.constant 1.000000e+00 : f32
    %327 = vector.broadcast %cst_51 : f32 to vector<2x128xf32>
    %328 = arith.addf %327, %326 : vector<2x128xf32>
    %329 = arith.divf %327, %328 : vector<2x128xf32>
    %330 = math.tanh %309 : vector<2x128xf32>
    %331 = vector.extract_strided_slice %329 {offsets = [0, 0], sizes = [2, 32], strides = [1, 1]} : vector<2x128xf32> to vector<2x32xf32>
    %332 = vector.extract_strided_slice %329 {offsets = [0, 32], sizes = [2, 32], strides = [1, 1]} : vector<2x128xf32> to vector<2x32xf32>
    %333 = vector.extract_strided_slice %330 {offsets = [0, 64], sizes = [2, 32], strides = [1, 1]} : vector<2x128xf32> to vector<2x32xf32>
    %334 = vector.extract_strided_slice %329 {offsets = [0, 96], sizes = [2, 32], strides = [1, 1]} : vector<2x128xf32> to vector<2x32xf32>
    %335 = arith.mulf %332, %296 : vector<2x32xf32>
    %336 = arith.mulf %331, %333 : vector<2x32xf32>
    %337 = arith.addf %335, %336 : vector<2x32xf32>
    %338 = math.tanh %337 : vector<2x32xf32>
    %339 = arith.mulf %334, %338 : vector<2x32xf32>
    %c14_52 = arith.constant 14 : index
    %c0_53 = arith.constant 0 : index
    %340 = vector.load %arg11[%c14_52, %c0_53] : memref<16x64xf32, #tpu.memory_space<vmem>>, vector<2x32xf32>
    tpu.vector_store %arg11[%c14_52, %c0_53], %324 {strides = array<i32>} : memref<16x64xf32, #tpu.memory_space<vmem>>, vector<2x32xf32>,
    %c0_54 = arith.constant 0 : index
    %c32_55 = arith.constant 32 : index
    %341 = vector.load %arg11[%c0_54, %c32_55] : memref<16x64xf32, #tpu.memory_space<vmem>>, vector<2x32xf32>
    tpu.vector_store %arg11[%c0_54, %c32_55], %339 {strides = array<i32>} : memref<16x64xf32, #tpu.memory_space<vmem>>, vector<2x32xf32>,
    %c0_56 = arith.constant 0 : index
    %c0_57 = arith.constant 0 : index
    %342 = vector.load %arg11[%c0_56, %c0_57] : memref<16x64xf32, #tpu.memory_space<vmem>>, vector<16x64xf32>
    %343 = arith.truncf %342 : vector<16x64xf32> to vector<16x64xbf16>
    %c0_58 = arith.constant 0 : index
    %c0_59 = arith.constant 0 : index
    %344 = vector.load %arg5[%c0_58, %c0_59] : memref<64x256xbf16, #tpu.memory_space<vmem>>, vector<64x256xbf16>
    %cst_60 = arith.constant dense<0.000000e+00> : vector<16x256xf32>
    %345 = tpu.matmul %343, %344, %cst_60 {dimension_numbers = #tpu.dot_dimension_numbers<[1], [0], [0], [1], [0, 0, 1, 1], [], []>} : vector<16x64xbf16>, vector<64x256xbf16>, vector<16x256xf32> -> vector<16x256xf32>
    %c0_61 = arith.constant 0 : index
    %c0_62 = arith.constant 0 : index
    %346 = vector.load %arg6[%c0_61, %c0_62] : memref<1x256xf32, #tpu.memory_space<vmem>>, vector<1x256xf32>
    %347 = vector.broadcast %346 : vector<1x256xf32> to vector<16x256xf32>
    %348 = arith.addf %345, %347 : vector<16x256xf32>
    %c0_63 = arith.constant 0 : index
    %c0_64 = arith.constant 0 : index
    %349 = vector.load %arg7[%c0_63, %c0_64] : memref<32x128xbf16, #tpu.memory_space<vmem>>, vector<32x128xbf16>
    %350 = arith.truncf %13 : vector<2x32xf32> to vector<2x32xbf16>
    %cst_65 = arith.constant dense<0.000000e+00> : vector<2x128xf32>
    %351 = tpu.matmul %350, %349, %cst_65 {dimension_numbers = #tpu.dot_dimension_numbers<[1], [0], [0], [1], [0, 0, 1, 1], [], []>} : vector<2x32xbf16>, vector<32x128xbf16>, vector<2x128xf32> -> vector<2x128xf32>
    %352 = vector.extract_strided_slice %348 {offsets = [0, 0], sizes = [2, 128], strides = [1, 1]} : vector<16x256xf32> to vector<2x128xf32>
    %353 = arith.addf %352, %351 : vector<2x128xf32>
    %354 = arith.negf %353 : vector<2x128xf32>
    %355 = math.exp %354 : vector<2x128xf32>
    %cst_66 = arith.constant 1.000000e+00 : f32
    %356 = vector.broadcast %cst_66 : f32 to vector<2x128xf32>
    %357 = arith.addf %356, %355 : vector<2x128xf32>
    %358 = arith.divf %356, %357 : vector<2x128xf32>
    %359 = math.tanh %353 : vector<2x128xf32>
    %360 = vector.extract_strided_slice %358 {offsets = [0, 0], sizes = [2, 32], strides = [1, 1]} : vector<2x128xf32> to vector<2x32xf32>
    %361 = vector.extract_strided_slice %358 {offsets = [0, 32], sizes = [2, 32], strides = [1, 1]} : vector<2x128xf32> to vector<2x32xf32>
    %362 = vector.extract_strided_slice %359 {offsets = [0, 64], sizes = [2, 32], strides = [1, 1]} : vector<2x128xf32> to vector<2x32xf32>
    %363 = vector.extract_strided_slice %358 {offsets = [0, 96], sizes = [2, 32], strides = [1, 1]} : vector<2x128xf32> to vector<2x32xf32>
    %364 = arith.mulf %361, %13 : vector<2x32xf32>
    %365 = arith.mulf %360, %362 : vector<2x32xf32>
    %366 = arith.addf %364, %365 : vector<2x32xf32>
    %367 = math.tanh %366 : vector<2x32xf32>
    %368 = arith.mulf %363, %367 : vector<2x32xf32>
    %369 = arith.truncf %368 : vector<2x32xf32> to vector<2x32xbf16>
    %cst_67 = arith.constant dense<0.000000e+00> : vector<2x128xf32>
    %370 = tpu.matmul %369, %349, %cst_67 {dimension_numbers = #tpu.dot_dimension_numbers<[1], [0], [0], [1], [0, 0, 1, 1], [], []>} : vector<2x32xbf16>, vector<32x128xbf16>, vector<2x128xf32> -> vector<2x128xf32>
    %371 = vector.extract_strided_slice %348 {offsets = [2, 0], sizes = [2, 128], strides = [1, 1]} : vector<16x256xf32> to vector<2x128xf32>
    %372 = arith.addf %371, %370 : vector<2x128xf32>
    %373 = arith.negf %372 : vector<2x128xf32>
    %374 = math.exp %373 : vector<2x128xf32>
    %cst_68 = arith.constant 1.000000e+00 : f32
    %375 = vector.broadcast %cst_68 : f32 to vector<2x128xf32>
    %376 = arith.addf %375, %374 : vector<2x128xf32>
    %377 = arith.divf %375, %376 : vector<2x128xf32>
    %378 = math.tanh %372 : vector<2x128xf32>
    %379 = vector.extract_strided_slice %377 {offsets = [0, 0], sizes = [2, 32], strides = [1, 1]} : vector<2x128xf32> to vector<2x32xf32>
    %380 = vector.extract_strided_slice %377 {offsets = [0, 32], sizes = [2, 32], strides = [1, 1]} : vector<2x128xf32> to vector<2x32xf32>
    %381 = vector.extract_strided_slice %378 {offsets = [0, 64], sizes = [2, 32], strides = [1, 1]} : vector<2x128xf32> to vector<2x32xf32>
    %382 = vector.extract_strided_slice %377 {offsets = [0, 96], sizes = [2, 32], strides = [1, 1]} : vector<2x128xf32> to vector<2x32xf32>
    %383 = arith.mulf %380, %366 : vector<2x32xf32>
    %384 = arith.mulf %379, %381 : vector<2x32xf32>
    %385 = arith.addf %383, %384 : vector<2x32xf32>
    %386 = math.tanh %385 : vector<2x32xf32>
    %387 = arith.mulf %382, %386 : vector<2x32xf32>
    %388 = arith.truncf %387 : vector<2x32xf32> to vector<2x32xbf16>
    %cst_69 = arith.constant dense<0.000000e+00> : vector<2x128xf32>
    %389 = tpu.matmul %388, %349, %cst_69 {dimension_numbers = #tpu.dot_dimension_numbers<[1], [0], [0], [1], [0, 0, 1, 1], [], []>} : vector<2x32xbf16>, vector<32x128xbf16>, vector<2x128xf32> -> vector<2x128xf32>
    %390 = vector.extract_strided_slice %348 {offsets = [4, 0], sizes = [2, 128], strides = [1, 1]} : vector<16x256xf32> to vector<2x128xf32>
    %391 = arith.addf %390, %389 : vector<2x128xf32>
    %392 = arith.negf %391 : vector<2x128xf32>
    %393 = math.exp %392 : vector<2x128xf32>
    %cst_70 = arith.constant 1.000000e+00 : f32
    %394 = vector.broadcast %cst_70 : f32 to vector<2x128xf32>
    %395 = arith.addf %394, %393 : vector<2x128xf32>
    %396 = arith.divf %394, %395 : vector<2x128xf32>
    %397 = math.tanh %391 : vector<2x128xf32>
    %398 = vector.extract_strided_slice %396 {offsets = [0, 0], sizes = [2, 32], strides = [1, 1]} : vector<2x128xf32> to vector<2x32xf32>
    %399 = vector.extract_strided_slice %396 {offsets = [0, 32], sizes = [2, 32], strides = [1, 1]} : vector<2x128xf32> to vector<2x32xf32>
    %400 = vector.extract_strided_slice %397 {offsets = [0, 64], sizes = [2, 32], strides = [1, 1]} : vector<2x128xf32> to vector<2x32xf32>
    %401 = vector.extract_strided_slice %396 {offsets = [0, 96], sizes = [2, 32], strides = [1, 1]} : vector<2x128xf32> to vector<2x32xf32>
    %402 = arith.mulf %399, %385 : vector<2x32xf32>
    %403 = arith.mulf %398, %400 : vector<2x32xf32>
    %404 = arith.addf %402, %403 : vector<2x32xf32>
    %405 = math.tanh %404 : vector<2x32xf32>
    %406 = arith.mulf %401, %405 : vector<2x32xf32>
    %407 = arith.truncf %406 : vector<2x32xf32> to vector<2x32xbf16>
    %cst_71 = arith.constant dense<0.000000e+00> : vector<2x128xf32>
    %408 = tpu.matmul %407, %349, %cst_71 {dimension_numbers = #tpu.dot_dimension_numbers<[1], [0], [0], [1], [0, 0, 1, 1], [], []>} : vector<2x32xbf16>, vector<32x128xbf16>, vector<2x128xf32> -> vector<2x128xf32>
    %409 = vector.extract_strided_slice %348 {offsets = [6, 0], sizes = [2, 128], strides = [1, 1]} : vector<16x256xf32> to vector<2x128xf32>
    %410 = arith.addf %409, %408 : vector<2x128xf32>
    %411 = arith.negf %410 : vector<2x128xf32>
    %412 = math.exp %411 : vector<2x128xf32>
    %cst_72 = arith.constant 1.000000e+00 : f32
    %413 = vector.broadcast %cst_72 : f32 to vector<2x128xf32>
    %414 = arith.addf %413, %412 : vector<2x128xf32>
    %415 = arith.divf %413, %414 : vector<2x128xf32>
    %416 = math.tanh %410 : vector<2x128xf32>
    %417 = vector.extract_strided_slice %415 {offsets = [0, 0], sizes = [2, 32], strides = [1, 1]} : vector<2x128xf32> to vector<2x32xf32>
    %418 = vector.extract_strided_slice %415 {offsets = [0, 32], sizes = [2, 32], strides = [1, 1]} : vector<2x128xf32> to vector<2x32xf32>
    %419 = vector.extract_strided_slice %416 {offsets = [0, 64], sizes = [2, 32], strides = [1, 1]} : vector<2x128xf32> to vector<2x32xf32>
    %420 = vector.extract_strided_slice %415 {offsets = [0, 96], sizes = [2, 32], strides = [1, 1]} : vector<2x128xf32> to vector<2x32xf32>
    %421 = arith.mulf %418, %404 : vector<2x32xf32>
    %422 = arith.mulf %417, %419 : vector<2x32xf32>
    %423 = arith.addf %421, %422 : vector<2x32xf32>
    %424 = math.tanh %423 : vector<2x32xf32>
    %425 = arith.mulf %420, %424 : vector<2x32xf32>
    %426 = arith.truncf %425 : vector<2x32xf32> to vector<2x32xbf16>
    %cst_73 = arith.constant dense<0.000000e+00> : vector<2x128xf32>
    %427 = tpu.matmul %426, %349, %cst_73 {dimension_numbers = #tpu.dot_dimension_numbers<[1], [0], [0], [1], [0, 0, 1, 1], [], []>} : vector<2x32xbf16>, vector<32x128xbf16>, vector<2x128xf32> -> vector<2x128xf32>
    %428 = vector.extract_strided_slice %348 {offsets = [8, 0], sizes = [2, 128], strides = [1, 1]} : vector<16x256xf32> to vector<2x128xf32>
    %429 = arith.addf %428, %427 : vector<2x128xf32>
    %430 = arith.negf %429 : vector<2x128xf32>
    %431 = math.exp %430 : vector<2x128xf32>
    %cst_74 = arith.constant 1.000000e+00 : f32
    %432 = vector.broadcast %cst_74 : f32 to vector<2x128xf32>
    %433 = arith.addf %432, %431 : vector<2x128xf32>
    %434 = arith.divf %432, %433 : vector<2x128xf32>
    %435 = math.tanh %429 : vector<2x128xf32>
    %436 = vector.extract_strided_slice %434 {offsets = [0, 0], sizes = [2, 32], strides = [1, 1]} : vector<2x128xf32> to vector<2x32xf32>
    %437 = vector.extract_strided_slice %434 {offsets = [0, 32], sizes = [2, 32], strides = [1, 1]} : vector<2x128xf32> to vector<2x32xf32>
    %438 = vector.extract_strided_slice %435 {offsets = [0, 64], sizes = [2, 32], strides = [1, 1]} : vector<2x128xf32> to vector<2x32xf32>
    %439 = vector.extract_strided_slice %434 {offsets = [0, 96], sizes = [2, 32], strides = [1, 1]} : vector<2x128xf32> to vector<2x32xf32>
    %440 = arith.mulf %437, %423 : vector<2x32xf32>
    %441 = arith.mulf %436, %438 : vector<2x32xf32>
    %442 = arith.addf %440, %441 : vector<2x32xf32>
    %443 = math.tanh %442 : vector<2x32xf32>
    %444 = arith.mulf %439, %443 : vector<2x32xf32>
    %445 = arith.truncf %444 : vector<2x32xf32> to vector<2x32xbf16>
    %cst_75 = arith.constant dense<0.000000e+00> : vector<2x128xf32>
    %446 = tpu.matmul %445, %349, %cst_75 {dimension_numbers = #tpu.dot_dimension_numbers<[1], [0], [0], [1], [0, 0, 1, 1], [], []>} : vector<2x32xbf16>, vector<32x128xbf16>, vector<2x128xf32> -> vector<2x128xf32>
    %447 = vector.extract_strided_slice %348 {offsets = [10, 0], sizes = [2, 128], strides = [1, 1]} : vector<16x256xf32> to vector<2x128xf32>
    %448 = arith.addf %447, %446 : vector<2x128xf32>
    %449 = arith.negf %448 : vector<2x128xf32>
    %450 = math.exp %449 : vector<2x128xf32>
    %cst_76 = arith.constant 1.000000e+00 : f32
    %451 = vector.broadcast %cst_76 : f32 to vector<2x128xf32>
    %452 = arith.addf %451, %450 : vector<2x128xf32>
    %453 = arith.divf %451, %452 : vector<2x128xf32>
    %454 = math.tanh %448 : vector<2x128xf32>
    %455 = vector.extract_strided_slice %453 {offsets = [0, 0], sizes = [2, 32], strides = [1, 1]} : vector<2x128xf32> to vector<2x32xf32>
    %456 = vector.extract_strided_slice %453 {offsets = [0, 32], sizes = [2, 32], strides = [1, 1]} : vector<2x128xf32> to vector<2x32xf32>
    %457 = vector.extract_strided_slice %454 {offsets = [0, 64], sizes = [2, 32], strides = [1, 1]} : vector<2x128xf32> to vector<2x32xf32>
    %458 = vector.extract_strided_slice %453 {offsets = [0, 96], sizes = [2, 32], strides = [1, 1]} : vector<2x128xf32> to vector<2x32xf32>
    %459 = arith.mulf %456, %442 : vector<2x32xf32>
    %460 = arith.mulf %455, %457 : vector<2x32xf32>
    %461 = arith.addf %459, %460 : vector<2x32xf32>
    %462 = math.tanh %461 : vector<2x32xf32>
    %463 = arith.mulf %458, %462 : vector<2x32xf32>
    %464 = arith.truncf %463 : vector<2x32xf32> to vector<2x32xbf16>
    %cst_77 = arith.constant dense<0.000000e+00> : vector<2x128xf32>
    %465 = tpu.matmul %464, %349, %cst_77 {dimension_numbers = #tpu.dot_dimension_numbers<[1], [0], [0], [1], [0, 0, 1, 1], [], []>} : vector<2x32xbf16>, vector<32x128xbf16>, vector<2x128xf32> -> vector<2x128xf32>
    %466 = vector.extract_strided_slice %348 {offsets = [12, 0], sizes = [2, 128], strides = [1, 1]} : vector<16x256xf32> to vector<2x128xf32>
    %467 = arith.addf %466, %465 : vector<2x128xf32>
    %468 = arith.negf %467 : vector<2x128xf32>
    %469 = math.exp %468 : vector<2x128xf32>
    %cst_78 = arith.constant 1.000000e+00 : f32
    %470 = vector.broadcast %cst_78 : f32 to vector<2x128xf32>
    %471 = arith.addf %470, %469 : vector<2x128xf32>
    %472 = arith.divf %470, %471 : vector<2x128xf32>
    %473 = math.tanh %467 : vector<2x128xf32>
    %474 = vector.extract_strided_slice %472 {offsets = [0, 0], sizes = [2, 32], strides = [1, 1]} : vector<2x128xf32> to vector<2x32xf32>
    %475 = vector.extract_strided_slice %472 {offsets = [0, 32], sizes = [2, 32], strides = [1, 1]} : vector<2x128xf32> to vector<2x32xf32>
    %476 = vector.extract_strided_slice %473 {offsets = [0, 64], sizes = [2, 32], strides = [1, 1]} : vector<2x128xf32> to vector<2x32xf32>
    %477 = vector.extract_strided_slice %472 {offsets = [0, 96], sizes = [2, 32], strides = [1, 1]} : vector<2x128xf32> to vector<2x32xf32>
    %478 = arith.mulf %475, %461 : vector<2x32xf32>
    %479 = arith.mulf %474, %476 : vector<2x32xf32>
    %480 = arith.addf %478, %479 : vector<2x32xf32>
    %481 = math.tanh %480 : vector<2x32xf32>
    %482 = arith.mulf %477, %481 : vector<2x32xf32>
    %483 = arith.truncf %482 : vector<2x32xf32> to vector<2x32xbf16>
    %cst_79 = arith.constant dense<0.000000e+00> : vector<2x128xf32>
    %484 = tpu.matmul %483, %349, %cst_79 {dimension_numbers = #tpu.dot_dimension_numbers<[1], [0], [0], [1], [0, 0, 1, 1], [], []>} : vector<2x32xbf16>, vector<32x128xbf16>, vector<2x128xf32> -> vector<2x128xf32>
    %485 = vector.extract_strided_slice %348 {offsets = [14, 0], sizes = [2, 128], strides = [1, 1]} : vector<16x256xf32> to vector<2x128xf32>
    %486 = arith.addf %485, %484 : vector<2x128xf32>
    %487 = arith.negf %486 : vector<2x128xf32>
    %488 = math.exp %487 : vector<2x128xf32>
    %cst_80 = arith.constant 1.000000e+00 : f32
    %489 = vector.broadcast %cst_80 : f32 to vector<2x128xf32>
    %490 = arith.addf %489, %488 : vector<2x128xf32>
    %491 = arith.divf %489, %490 : vector<2x128xf32>
    %492 = math.tanh %486 : vector<2x128xf32>
    %493 = vector.extract_strided_slice %491 {offsets = [0, 0], sizes = [2, 32], strides = [1, 1]} : vector<2x128xf32> to vector<2x32xf32>
    %494 = vector.extract_strided_slice %491 {offsets = [0, 32], sizes = [2, 32], strides = [1, 1]} : vector<2x128xf32> to vector<2x32xf32>
    %495 = vector.extract_strided_slice %492 {offsets = [0, 64], sizes = [2, 32], strides = [1, 1]} : vector<2x128xf32> to vector<2x32xf32>
    %496 = vector.extract_strided_slice %491 {offsets = [0, 96], sizes = [2, 32], strides = [1, 1]} : vector<2x128xf32> to vector<2x32xf32>
    %497 = arith.mulf %494, %480 : vector<2x32xf32>
    %498 = arith.mulf %493, %495 : vector<2x32xf32>
    %499 = arith.addf %497, %498 : vector<2x32xf32>
    %500 = math.tanh %499 : vector<2x32xf32>
    %501 = arith.mulf %496, %500 : vector<2x32xf32>
    %502 = vector.extract_strided_slice %348 {offsets = [14, 128], sizes = [2, 128], strides = [1, 1]} : vector<16x256xf32> to vector<2x128xf32>
    %503 = arith.negf %502 : vector<2x128xf32>
    %504 = math.exp %503 : vector<2x128xf32>
    %cst_81 = arith.constant 1.000000e+00 : f32
    %505 = vector.broadcast %cst_81 : f32 to vector<2x128xf32>
    %506 = arith.addf %505, %504 : vector<2x128xf32>
    %507 = arith.divf %505, %506 : vector<2x128xf32>
    %508 = math.tanh %502 : vector<2x128xf32>
    %509 = vector.extract_strided_slice %507 {offsets = [0, 0], sizes = [2, 32], strides = [1, 1]} : vector<2x128xf32> to vector<2x32xf32>
    %510 = vector.extract_strided_slice %507 {offsets = [0, 32], sizes = [2, 32], strides = [1, 1]} : vector<2x128xf32> to vector<2x32xf32>
    %511 = vector.extract_strided_slice %508 {offsets = [0, 64], sizes = [2, 32], strides = [1, 1]} : vector<2x128xf32> to vector<2x32xf32>
    %512 = vector.extract_strided_slice %507 {offsets = [0, 96], sizes = [2, 32], strides = [1, 1]} : vector<2x128xf32> to vector<2x32xf32>
    %513 = arith.mulf %510, %13 : vector<2x32xf32>
    %514 = arith.mulf %509, %511 : vector<2x32xf32>
    %515 = arith.addf %513, %514 : vector<2x32xf32>
    %516 = math.tanh %515 : vector<2x32xf32>
    %517 = arith.mulf %512, %516 : vector<2x32xf32>
    %c0_82 = arith.constant 0 : index
    %c0_83 = arith.constant 0 : index
    %518 = vector.load %arg8[%c0_82, %c0_83] : memref<64x10xbf16, #tpu.memory_space<vmem>>, vector<64x10xbf16>
    %519 = arith.truncf %501 : vector<2x32xf32> to vector<2x32xbf16>
    %520 = vector.extract_strided_slice %518 {offsets = [0, 0], sizes = [32, 10], strides = [1, 1]} : vector<64x10xbf16> to vector<32x10xbf16>
    %cst_84 = arith.constant dense<0.000000e+00> : vector<2x10xf32>
    %521 = tpu.matmul %519, %520, %cst_84 {dimension_numbers = #tpu.dot_dimension_numbers<[1], [0], [0], [1], [0, 0, 1, 1], [], []>} : vector<2x32xbf16>, vector<32x10xbf16>, vector<2x10xf32> -> vector<2x10xf32>
    %522 = arith.truncf %517 : vector<2x32xf32> to vector<2x32xbf16>
    %523 = vector.extract_strided_slice %518 {offsets = [32, 0], sizes = [32, 10], strides = [1, 1]} : vector<64x10xbf16> to vector<32x10xbf16>
    %cst_85 = arith.constant dense<0.000000e+00> : vector<2x10xf32>
    %524 = tpu.matmul %522, %523, %cst_85 {dimension_numbers = #tpu.dot_dimension_numbers<[1], [0], [0], [1], [0, 0, 1, 1], [], []>} : vector<2x32xbf16>, vector<32x10xbf16>, vector<2x10xf32> -> vector<2x10xf32>
    %525 = arith.addf %521, %524 : vector<2x10xf32>
    %c0_86 = arith.constant 0 : index
    %c0_87 = arith.constant 0 : index
    %526 = vector.load %arg9[%c0_86, %c0_87] : memref<1x10xf32, #tpu.memory_space<vmem>>, vector<1x10xf32>
    %527 = vector.broadcast %526 : vector<1x10xf32> to vector<2x10xf32>
    %528 = arith.addf %525, %527 : vector<2x10xf32>
    %c0_88 = arith.constant 0 : index
    %c0_89 = arith.constant 0 : index
    %529 = vector.load %arg10[%c0_88, %c0_89] : memref<2x10xf32, #tpu.memory_space<vmem>>, vector<2x10xf32>
    tpu.vector_store %arg10[%c0_88, %c0_89], %528 {strides = array<i32>} : memref<2x10xf32, #tpu.memory_space<vmem>>, vector<2x10xf32>,
    return
  }
  func.func @transform_0(%arg0: i32) -> (i32, i32) {
    %c0_i32 = arith.constant 0 : i32
    %c0_i32_0 = arith.constant 0 : i32
    %c0_i32_1 = arith.constant 0 : i32
    return %c0_i32, %c0_i32_0 : i32, i32
  }
  func.func @transform_1(%arg0: i32) -> (i32, i32) {
    %c0_i32 = arith.constant 0 : i32
    %c0_i32_0 = arith.constant 0 : i32
    %c0_i32_1 = arith.constant 0 : i32
    return %c0_i32, %c0_i32_0 : i32, i32
  }
  func.func @transform_2(%arg0: i32) -> (i32, i32) {
    %c0_i32 = arith.constant 0 : i32
    %c0_i32_0 = arith.constant 0 : i32
    %c0_i32_1 = arith.constant 0 : i32
    return %c0_i32, %c0_i32_0 : i32, i32
  }
  func.func @transform_3(%arg0: i32) -> (i32, i32) {
    %c0_i32 = arith.constant 0 : i32
    %c0_i32_0 = arith.constant 0 : i32
    %c0_i32_1 = arith.constant 0 : i32
    return %c0_i32, %c0_i32_0 : i32, i32
  }
  func.func @transform_4(%arg0: i32) -> (i32, i32) {
    %c0_i32 = arith.constant 0 : i32
    %c0_i32_0 = arith.constant 0 : i32
    %c0_i32_1 = arith.constant 0 : i32
    return %c0_i32, %c0_i32_0 : i32, i32
  }
  func.func @transform_5(%arg0: i32) -> (i32, i32) {
    %c0_i32 = arith.constant 0 : i32
    %c0_i32_0 = arith.constant 0 : i32
    %c0_i32_1 = arith.constant 0 : i32
    return %c0_i32, %c0_i32_0 : i32, i32
  }
  func.func @transform_6(%arg0: i32) -> (i32, i32) {
    %c0_i32 = arith.constant 0 : i32
    %c0_i32_0 = arith.constant 0 : i32
    %c0_i32_1 = arith.constant 0 : i32
    return %c0_i32, %c0_i32_0 : i32, i32
  }
  func.func @transform_7(%arg0: i32) -> (i32, i32) {
    %c0_i32 = arith.constant 0 : i32
    %c0_i32_0 = arith.constant 0 : i32
    %c0_i32_1 = arith.constant 0 : i32
    return %c0_i32, %c0_i32_0 : i32, i32
  }
  func.func @transform_8(%arg0: i32) -> (i32, i32) {
    %c0_i32 = arith.constant 0 : i32
    %c0_i32_0 = arith.constant 0 : i32
    %c0_i32_1 = arith.constant 0 : i32
    return %c0_i32, %c0_i32_0 : i32, i32
  }
  func.func @transform_9(%arg0: i32) -> (i32, i32) {
    %c0_i32 = arith.constant 0 : i32
    %c0_i32_0 = arith.constant 0 : i32
    %c0_i32_1 = arith.constant 0 : i32
    return %c0_i32, %c0_i32_0 : i32, i32
  }
}

</mosaic_0001>

<llo_original>
// kernel: fused_forward.1
$region0: #{fused_forward.1}
  #allocation0 [shape = 'u32[]', space=smem, size = 0x4, offset = 0x4, fixed_abs, tag = 'smem constant byte address 0x4 - core index']
  #allocation1 [shape = 'u32[144,128]{1,0:T(1,128)}', space=vmem, size = 0x12000, scoped, tag = 'internal scratch']
  #allocation2 [shape = 'f32[16,64]{1,0:T(8,128)}', space=vmem, size = 0x2000, scoped, tag = 'scratch operand']
  %s0 = inlined_call_operand.vmem [shape: s32[16,1], index: 0, kind: input, shape index: {}]
  %s1 = inlined_call_operand.vmem [shape: bf16[50,256], index: 1, kind: input, shape index: {}]
  %s2 = inlined_call_operand.vmem [shape: f32[1,256], index: 2, kind: input, shape index: {}]
  %s3 = inlined_call_operand.vmem [shape: bf16[64,256], index: 3, kind: input, shape index: {}]
  %s4 = inlined_call_operand.vmem [shape: bf16[64,256], index: 4, kind: input, shape index: {}]
  %s5 = inlined_call_operand.vmem [shape: f32[1,256], index: 5, kind: input, shape index: {}]
  %s6 = inlined_call_operand.vmem [shape: bf16[32,128], index: 6, kind: input, shape index: {}]
  %s7 = inlined_call_operand.vmem [shape: bf16[64,10], index: 7, kind: input, shape index: {}]
  %s8 = inlined_call_operand.vmem [shape: f32[1,10], index: 8, kind: input, shape index: {}]
  %s9 = inlined_call_operand.hbm [shape: f32[2,10], index: 9, kind: output, shape index: {}]
  %s10 = sld [smem:[#allocation0]]
  $region46: #{fused_forward.1} parent=0
    _
  %s12 = ssub.s32 1, %s10
  %s13 = scalar_select 0, %s12, %s10
  $region1: #{fused_forward.1} parent=0
    #allocation3 [shape = 'u8[1024]{0}', space=vmem, size = 0x400, scoped, tag = 'output window, operand 0, single buffered']
    #allocation4 [shape = 's32[1]{0}', space=sflag, size = 0x4, scoped, tag = 'scoped memory for fused_forward.1']
    %14 = vsyncpa [#allocation4], 0
    // Predicated region
    $region2: #{fused_forward.1} parent=1 // pred_check
      _
    $region3: #{fused_forward.1} parent=1 // pred_check_branch
      %16 = sbr.rel (0) target = $region5
    $region4: #{fused_forward.1} parent=1 // pred_region
      _
    $region5: #{fused_forward.1} parent=1 // pred_fallthru
      _
    // Predicated region
    $region6: #{fused_forward.1} parent=1 // pred_check
      _
    $region7: #{fused_forward.1} parent=1 // pred_check_branch
      %18 = sbr.rel (0) target = $region9
    $region8: #{fused_forward.1} parent=1 // pred_region
      _
    $region9: #{fused_forward.1} parent=1 // pred_fallthru
      _
    // Predicated region
    $region10: #{fused_forward.1} parent=1 // pred_check
      _
    $region11: #{fused_forward.1} parent=1 // pred_check_branch
      %20 = sbr.rel (0) target = $region13
    $region12: #{fused_forward.1} parent=1 // pred_region
      _
    $region13: #{fused_forward.1} parent=1 // pred_fallthru
      _
    // Predicated region
    $region14: #{fused_forward.1} parent=1 // pred_check
      _
    $region15: #{fused_forward.1} parent=1 // pred_check_branch
      %22 = sbr.rel (0) target = $region17
    $region16: #{fused_forward.1} parent=1 // pred_region
      _
    $region17: #{fused_forward.1} parent=1 // pred_fallthru
      _
    // Predicated region
    $region18: #{fused_forward.1} parent=1 // pred_check
      _
    $region19: #{fused_forward.1} parent=1 // pred_check_branch
      %24 = sbr.rel (0) target = $region21
    $region20: #{fused_forward.1} parent=1 // pred_region
      _
    $region21: #{fused_forward.1} parent=1 // pred_fallthru
      _
    // Predicated region
    $region22: #{fused_forward.1} parent=1 // pred_check
      _
    $region23: #{fused_forward.1} parent=1 // pred_check_branch
      %26 = sbr.rel (0) target = $region25
    $region24: #{fused_forward.1} parent=1 // pred_region
      _
    $region25: #{fused_forward.1} parent=1 // pred_fallthru
      _
    // Predicated region
    $region26: #{fused_forward.1} parent=1 // pred_check
      _
    $region27: #{fused_forward.1} parent=1 // pred_check_branch
      %28 = sbr.rel (0) target = $region29
    $region28: #{fused_forward.1} parent=1 // pred_region
      _
    $region29: #{fused_forward.1} parent=1 // pred_fallthru
      _
    // Predicated region
    $region30: #{fused_forward.1} parent=1 // pred_check
      _
    $region31: #{fused_forward.1} parent=1 // pred_check_branch
      %30 = sbr.rel (0) target = $region33
    $region32: #{fused_forward.1} parent=1 // pred_region
      _
    $region33: #{fused_forward.1} parent=1 // pred_fallthru
      _
    // Predicated region
    $region34: #{fused_forward.1} parent=1 // pred_check
      _
    $region35: #{fused_forward.1} parent=1 // pred_check_branch
      %32 = sbr.rel (0) target = $region37
    $region36: #{fused_forward.1} parent=1 // pred_region
      _
    $region37: #{fused_forward.1} parent=1 // pred_fallthru
      _
    %v34 = vld [vmem:[%s0] sm:$0xff]
    %v35 = vld [vmem:[%s0 + $0x8] sm:$0xff]
    %v36 = vlaneseq
    %v37 = vand.u32 %v36, 127
    %38 = vset.pattern.permute.xlu0 0
    %39 = vperm.xlu0 %38, %v34
    %v40 = vpop.permute.xlu0 %39
    %41 = vset.pattern.permute.xlu0 0
    %42 = vperm.xlu0 %41, %v35
    %v43 = vpop.permute.xlu0 %42
    %vm44 = vcmp.eq.s32.totalorder %v37, %v40
    %vm45 = vcmp.eq.s32.totalorder %v37, %v43
    %v46 = vsel %vm44, 1, 0
    %v47 = vsel %vm45, 1, 0
    %v48 = vcvt.s32.f32 %v46
    %v49 = vcvt.s32.f32 %v47
    %v50 = vpack.c.bf16 %v49, %v48
    %v51 = vld [vmem:[%s1] sm:$0xff]
    %v52 = vld [vmem:[%s1 + $0x8] sm:$0xff]
    %v53 = vld [vmem:[%s1 + $0x10] sm:$0xff]
    %v54 = vld [vmem:[%s1 + $0x18] sm:$0xff]
    %v55 = vld [vmem:[%s1 + $0x20] sm:$0xff]
    %v56 = vld [vmem:[%s1 + $0x28] sm:$0xff]
    %v57 = vld [vmem:[%s1 + $0x30] sm:$0x11]
    %v58 = vld [vmem:[%s2] sm:$0x3]
    %v60 = vlaneseq
    %v61 = vshrl.u32 %v60, 7
    %v62 = vsub.s32 0, %v61
    %v63 = vrot.slane %v58, %v62
    %v64 = vlaneseq
    %v65 = vshrl.u32 %v64, 7
    %v66 = vsub.s32 1, %v65
    %v67 = vrot.slane %v58, %v66
    %v77 = vunpack.c.l.b16 %v51
    %v78 = vunpack.c.h.b16 %v51
    %v79 = vunpack.c.l.b16 %v52
    %v80 = vunpack.c.h.b16 %v52
    %v81 = vunpack.c.l.b16 %v53
    %v82 = vunpack.c.h.b16 %v53
    %v83 = vunpack.c.l.b16 %v54
    %v84 = vunpack.c.h.b16 %v54
    %v85 = vunpack.c.l.b16 %v55
    %v86 = vunpack.c.h.b16 %v55
    %v87 = vunpack.c.l.b16 %v56
    %v88 = vunpack.c.h.b16 %v56
    %v89 = vunpack.c.l.b16 %v57
    %v90 = vunpack.c.h.b16 %v57
    %v91 = vpack.c.b16 %v79, %v77
    %v92 = vpack.c.b16 %v80, %v78
    %v93 = vpack.c.b16 %v83, %v81
    %v94 = vpack.c.b16 %v84, %v82
    %v95 = vpack.c.b16 %v87, %v85
    %v96 = vpack.c.b16 %v88, %v86
    %v97 = vpack.c.b16 %v89, %v89
    %v98 = vpack.c.b16 %v90, %v90
    %vm105 = vcmask 408576
    %v107 = vsel %vm105, %v50, 0
    %vm109 = vcmask 1040384
    %v111 = vsel %vm109, %v97, 0
    %v114 = vsel %vm109, %v98, 0
    %116 = vmatprep.subr.bf16.mxu0 %v92
    %117 = vmatpush1.bf16.msra.mxu0 %v91
    %118 = vmatprep.subr.bf16.mxu0 %v94
    %119 = vmatpush1.bf16.msra.mxu0 %v93
    %120 = vmatprep.subr.bf16.mxu0 %v96
    %121 = vmatpush1.bf16.msra.mxu0 %v95
    %122 = vmatprep.subr.bf16.mxu0 %v114
    %123 = vmatpush1.bf16.msra.mxu0 %v111
    %124 = vmatprep.subr.bf16.mxu0 0
    %125 = vmatpush1.bf16.msra.mxu0 0
    %126 = vmatprep.subr.bf16.mxu0 0
    %127 = vmatpush1.bf16.msra.mxu0 0
    %128 = vmatprep.subr.bf16.mxu0 0
    %129 = vmatpush1.bf16.msra.mxu0 0
    %130 = vmatprep.subr.bf16.mxu0 0
    %131 = vmatpush1.bf16.msra.mxu0 0
    %132 = vmatprep.subr.bf16.mxu0 0
    %133 = vmatpush1.bf16.msra.mxu0 0
    %134 = vmatprep.subr.bf16.mxu0 0
    %135 = vmatpush1.bf16.msra.mxu0 0
    %136 = vmatprep.subr.bf16.mxu0 0
    %137 = vmatpush1.bf16.msra.mxu0 0
    %138 = vmatprep.subr.bf16.mxu0 0
    %139 = vmatpush1.bf16.msra.mxu0 0
    %140 = vmatprep.subr.bf16.mxu0 0
    %141 = vmatpush1.bf16.msra.mxu0 0
    %142 = vmatprep.subr.bf16.mxu0 0
    %143 = vmatpush1.bf16.msra.mxu0 0
    %144 = vmatprep.subr.bf16.mxu0 0
    %145 = vmatpush1.bf16.msra.mxu0 0
    %146 = vmatprep.subr.bf16.mxu0 0
    %147 = vmatpush1.bf16.msra.mxu0 0
    %148 = vmatprep.mubr.bf16.mxu0 0
    %149 = vmatmul.mubr.bf16.gmra.mrb[0].mxu0 %v107
    %v150 = vpop.f32.mrb[0].mxu0
    %v151 = vadd.f32 %v63, %v150
    %v152 = vpop.f32.mrb[0].mxu0
    %v153 = vadd.f32 %v67, %v152
    %v154 = vpop.f32.mrb[0].mxu0
    %v155 = vadd.f32 %v63, %v154
    %v156 = vpop.f32.mrb[0].mxu0
    %v157 = vadd.f32 %v67, %v156
    %158 = vdwg.mxu0
    %v159 = vld [vmem:[%s3] sm:$0xff]
    %v160 = vld [vmem:[%s3 + $0x8] sm:$0xff]
    %v161 = vld [vmem:[%s3 + $0x10] sm:$0xff]
    %v162 = vld [vmem:[%s3 + $0x18] sm:$0xff]
    %v163 = vld [vmem:[%s3 + $0x20] sm:$0xff]
    %v164 = vld [vmem:[%s3 + $0x28] sm:$0xff]
    %v165 = vld [vmem:[%s3 + $0x30] sm:$0xff]
    %v166 = vld [vmem:[%s3 + $0x38] sm:$0xff]
    %v167 = vpack.c.bf16 0.0, 0.0
    %v176 = vunpack.c.l.b16 %v159
    %v177 = vunpack.c.h.b16 %v159
    %v178 = vunpack.c.l.b16 %v160
    %v179 = vunpack.c.h.b16 %v160
    %v180 = vunpack.c.l.b16 %v161
    %v181 = vunpack.c.h.b16 %v161
    %v182 = vunpack.c.l.b16 %v162
    %v183 = vunpack.c.h.b16 %v162
    %v184 = vunpack.c.l.b16 %v163
    %v185 = vunpack.c.h.b16 %v163
    %v186 = vunpack.c.l.b16 %v164
    %v187 = vunpack.c.h.b16 %v164
    %v188 = vunpack.c.l.b16 %v165
    %v189 = vunpack.c.h.b16 %v165
    %v190 = vunpack.c.l.b16 %v166
    %v191 = vunpack.c.h.b16 %v166
    %v192 = vpack.c.b16 %v178, %v176
    %v193 = vpack.c.b16 %v179, %v177
    %v194 = vpack.c.b16 %v182, %v180
    %v195 = vpack.c.b16 %v183, %v181
    %v196 = vpack.c.b16 %v186, %v184
    %v197 = vpack.c.b16 %v187, %v185
    %v198 = vpack.c.b16 %v190, %v188
    %v199 = vpack.c.b16 %v191, %v189
    %vm208 = vcmask 523264
    %v210 = vsel %vm208, %v167, 0
    %212 = vmatprep.subr.bf16.mxu0 %v193
    %213 = vmatpush1.bf16.msra.mxu0 %v192
    %214 = vmatprep.subr.bf16.mxu0 %v195
    %215 = vmatpush1.bf16.msra.mxu0 %v194
    %216 = vmatprep.subr.bf16.mxu0 %v197
    %217 = vmatpush1.bf16.msra.mxu0 %v196
    %218 = vmatprep.subr.bf16.mxu0 %v199
    %219 = vmatpush1.bf16.msra.mxu0 %v198
    %220 = vmatprep.subr.bf16.mxu0 0
    %221 = vmatpush1.bf16.msra.mxu0 0
    %222 = vmatprep.subr.bf16.mxu0 0
    %223 = vmatpush1.bf16.msra.mxu0 0
    %224 = vmatprep.subr.bf16.mxu0 0
    %225 = vmatpush1.bf16.msra.mxu0 0
    %226 = vmatprep.subr.bf16.mxu0 0
    %227 = vmatpush1.bf16.msra.mxu0 0
    %228 = vmatprep.subr.bf16.mxu0 0
    %229 = vmatpush1.bf16.msra.mxu0 0
    %230 = vmatprep.subr.bf16.mxu0 0
    %231 = vmatpush1.bf16.msra.mxu0 0
    %232 = vmatprep.subr.bf16.mxu0 0
    %233 = vmatpush1.bf16.msra.mxu0 0
    %234 = vmatprep.subr.bf16.mxu0 0
    %235 = vmatpush1.bf16.msra.mxu0 0
    %236 = vmatprep.subr.bf16.mxu0 0
    %237 = vmatpush1.bf16.msra.mxu0 0
    %238 = vmatprep.subr.bf16.mxu0 0
    %239 = vmatpush1.bf16.msra.mxu0 0
    %240 = vmatprep.subr.bf16.mxu0 0
    %241 = vmatpush1.bf16.msra.mxu0 0
    %242 = vmatprep.subr.bf16.mxu0 0
    %243 = vmatpush1.bf16.msra.mxu0 0
    %244 = vmatprep.mubr.bf16.mxu0 0
    %245 = vmatmul.mubr.bf16.gmra.mrb[0].mxu0 %v210
    %v246 = vpop.f32.mrb[0].mxu0
    %v247 = vadd.f32 0.0, %v246
    %v248 = vpop.f32.mrb[0].mxu0
    %v249 = vadd.f32 0.0, %v248
    %v250 = vpop.f32.mrb[0].mxu0
    %v251 = vpop.f32.mrb[0].mxu0
    %252 = vdwg.mxu0
    %v253 = vadd.f32 %v151, %v247
    %v255 = vrot.slane %v249, 2
    %v257 = vadd.f32 %v157, %v255
    %v258 = vxor.u32 %v253, 2147483648
    %v259 = vmul.f32 %v258, 1.442695
    %v260 = vpow.pop %v259
    %v261 = vadd.f32 %v260, 1.0
    %v262 = vrcp.pop %v261
    %v263 = vmul.f32 1.0, %v262
    %v264 = vtanh.pop %v253
    %v265 = vmul.f32 %v263, 0.0
    %267 = vrot.lane.b32.xlu0 %v264, 64
    %v268 = vpop.permute.xlu0 %267
    %v270 = vmul.f32 %v263, %v268
    %272 = vrot.lane.b32.xlu0 %v270, 32
    %v273 = vpop.permute.xlu0 %272
    %v275 = vadd.f32 %v265, %v273
    %v276 = vtanh.pop %v275
    %278 = vrot.lane.b32.xlu0 %v276, 64
    %v279 = vpop.permute.xlu0 %278
    %v281 = vmul.f32 %v263, %v279
    %v282 = vxor.u32 %v257, 2147483648
    %v283 = vmul.f32 %v282, 1.442695
    %v284 = vpow.pop %v283
    %v285 = vadd.f32 %v284, 1.0
    %v286 = vrcp.pop %v285
    %v287 = vmul.f32 1.0, %v286
    %v288 = vtanh.pop %v257
    %v289 = vmul.f32 %v287, 0.0
    %291 = vrot.lane.b32.xlu0 %v288, 64
    %v292 = vpop.permute.xlu0 %291
    %v294 = vmul.f32 %v287, %v292
    %296 = vrot.lane.b32.xlu0 %v294, 32
    %v297 = vpop.permute.xlu0 %296
    %v299 = vadd.f32 %v289, %v297
    %v300 = vtanh.pop %v299
    %302 = vrot.lane.b32.xlu0 %v300, 64
    %v303 = vpop.permute.xlu0 %302
    %v305 = vmul.f32 %v287, %v303
    %307 = vrot.lane.b32.xlu0 %v281, 32
    %v308 = vpop.permute.xlu0 %307
    %vm310 = vcmask 254976
    %311 = vst.msk [vmem:[#allocation2] sm:$0x3] %vm310, %v308
    %313 = vrot.lane.b32.xlu0 %v305, 64
    %v314 = vpop.permute.xlu0 %313
    %vm316 = vcmask 523526
    %317 = vst.msk [vmem:[#allocation2 + $0x8] sm:$0xc0] %vm316, %v314
    %v318 = vrot.slane %v305, 6
    %319 = vrot.lane.b32.xlu0 %v318, 64
    %v320 = vpop.permute.xlu0 %319
    %vm322 = vcmask 261120
    %v323 = vsel %vm322, %v308, %v320
    %v324 = vpack.c.bf16 %v323, %v323
    %v326 = vsel %vm208, %v324, 0
    %328 = vmatprep.subr.bf16.mxu0 %v193
    %329 = vmatpush1.bf16.msra.mxu0 %v192
    %330 = vmatprep.subr.bf16.mxu0 %v195
    %331 = vmatpush1.bf16.msra.mxu0 %v194
    %332 = vmatprep.subr.bf16.mxu0 %v197
    %333 = vmatpush1.bf16.msra.mxu0 %v196
    %334 = vmatprep.subr.bf16.mxu0 %v199
    %335 = vmatpush1.bf16.msra.mxu0 %v198
    %336 = vmatprep.subr.bf16.mxu0 0
    %337 = vmatpush1.bf16.msra.mxu0 0
    %338 = vmatprep.subr.bf16.mxu0 0
    %339 = vmatpush1.bf16.msra.mxu0 0
    %340 = vmatprep.subr.bf16.mxu0 0
    %341 = vmatpush1.bf16.msra.mxu0 0
    %342 = vmatprep.subr.bf16.mxu0 0
    %343 = vmatpush1.bf16.msra.mxu0 0
    %344 = vmatprep.subr.bf16.mxu0 0
    %345 = vmatpush1.bf16.msra.mxu0 0
    %346 = vmatprep.subr.bf16.mxu0 0
    %347 = vmatpush1.bf16.msra.mxu0 0
    %348 = vmatprep.subr.bf16.mxu0 0
    %349 = vmatpush1.bf16.msra.mxu0 0
    %350 = vmatprep.subr.bf16.mxu0 0
    %351 = vmatpush1.bf16.msra.mxu0 0
    %352 = vmatprep.subr.bf16.mxu0 0
    %353 = vmatpush1.bf16.msra.mxu0 0
    %354 = vmatprep.subr.bf16.mxu0 0
    %355 = vmatpush1.bf16.msra.mxu0 0
    %356 = vmatprep.subr.bf16.mxu0 0
    %357 = vmatpush1.bf16.msra.mxu0 0
    %358 = vmatprep.subr.bf16.mxu0 0
    %359 = vmatpush1.bf16.msra.mxu0 0
    %360 = vmatprep.mubr.bf16.mxu0 0
    %361 = vmatmul.mubr.bf16.gmra.mrb[0].mxu0 %v326
    %v362 = vpop.f32.mrb[0].mxu0
    %v363 = vadd.f32 0.0, %v362
    %v364 = vpop.f32.mrb[0].mxu0
    %v365 = vadd.f32 0.0, %v364
    %v366 = vpop.f32.mrb[0].mxu0
    %v367 = vpop.f32.mrb[0].mxu0
    %368 = vdwg.mxu0
    %v370 = vrot.slane %v363, 6
    %v372 = vadd.f32 %v151, %v370
    %v374 = vrot.slane %v365, 4
    %v376 = vadd.f32 %v157, %v374
    %v377 = vxor.u32 %v372, 2147483648
    %v378 = vmul.f32 %v377, 1.442695
    %v379 = vpow.pop %v378
    %v380 = vadd.f32 %v379, 1.0
    %v381 = vrcp.pop %v380
    %v382 = vmul.f32 1.0, %v381
    %v383 = vtanh.pop %v372
    %v385 = vrot.slane %v275, 6
    %v387 = vmul.f32 %v382, %v385
    %389 = vrot.lane.b32.xlu0 %v383, 64
    %v390 = vpop.permute.xlu0 %389
    %v392 = vmul.f32 %v382, %v390
    %394 = vrot.lane.b32.xlu0 %v392, 32
    %v395 = vpop.permute.xlu0 %394
    %v397 = vadd.f32 %v387, %v395
    %v398 = vtanh.pop %v397
    %400 = vrot.lane.b32.xlu0 %v398, 64
    %v401 = vpop.permute.xlu0 %400
    %v403 = vmul.f32 %v382, %v401
    %v404 = vxor.u32 %v376, 2147483648
    %v405 = vmul.f32 %v404, 1.442695
    %v406 = vpow.pop %v405
    %v407 = vadd.f32 %v406, 1.0
    %v408 = vrcp.pop %v407
    %v409 = vmul.f32 1.0, %v408
    %v410 = vtanh.pop %v376
    %v412 = vrot.slane %v299, 2
    %v414 = vmul.f32 %v409, %v412
    %416 = vrot.lane.b32.xlu0 %v410, 64
    %v417 = vpop.permute.xlu0 %416
    %v419 = vmul.f32 %v409, %v417
    %421 = vrot.lane.b32.xlu0 %v419, 32
    %v422 = vpop.permute.xlu0 %421
    %v424 = vadd.f32 %v414, %v422
    %v425 = vtanh.pop %v424
    %427 = vrot.lane.b32.xlu0 %v425, 64
    %v428 = vpop.permute.xlu0 %427
    %v430 = vmul.f32 %v409, %v428
    %432 = vrot.lane.b32.xlu0 %v403, 32
    %v433 = vpop.permute.xlu0 %432
    %vm435 = vcmask 257026
    %436 = vst.msk [vmem:[#allocation2] sm:$0xc] %vm435, %v433
    %438 = vrot.lane.b32.xlu0 %v430, 64
    %v439 = vpop.permute.xlu0 %438
    %vm441 = vcmask 521476
    %442 = vst.msk [vmem:[#allocation2 + $0x8] sm:$0x30] %vm441, %v439
    %v443 = vrot.slane %v430, 2
    %444 = vrot.lane.b32.xlu0 %v443, 64
    %v445 = vpop.permute.xlu0 %444
    %v447 = vsel %vm322, %v433, %v445
    %v448 = vpack.c.bf16 %v447, %v447
    %v450 = vrot.slane %v448, 1
    %v452 = vsel %vm208, %v450, 0
    %454 = vmatprep.subr.bf16.mxu0 %v193
    %455 = vmatpush1.bf16.msra.mxu0 %v192
    %456 = vmatprep.subr.bf16.mxu0 %v195
    %457 = vmatpush1.bf16.msra.mxu0 %v194
    %458 = vmatprep.subr.bf16.mxu0 %v197
    %459 = vmatpush1.bf16.msra.mxu0 %v196
    %460 = vmatprep.subr.bf16.mxu0 %v199
    %461 = vmatpush1.bf16.msra.mxu0 %v198
    %462 = vmatprep.subr.bf16.mxu0 0
    %463 = vmatpush1.bf16.msra.mxu0 0
    %464 = vmatprep.subr.bf16.mxu0 0
    %465 = vmatpush1.bf16.msra.mxu0 0
    %466 = vmatprep.subr.bf16.mxu0 0
    %467 = vmatpush1.bf16.msra.mxu0 0
    %468 = vmatprep.subr.bf16.mxu0 0
    %469 = vmatpush1.bf16.msra.mxu0 0
    %470 = vmatprep.subr.bf16.mxu0 0
    %471 = vmatpush1.bf16.msra.mxu0 0
    %472 = vmatprep.subr.bf16.mxu0 0
    %473 = vmatpush1.bf16.msra.mxu0 0
    %474 = vmatprep.subr.bf16.mxu0 0
    %475 = vmatpush1.bf16.msra.mxu0 0
    %476 = vmatprep.subr.bf16.mxu0 0
    %477 = vmatpush1.bf16.msra.mxu0 0
    %478 = vmatprep.subr.bf16.mxu0 0
    %479 = vmatpush1.bf16.msra.mxu0 0
    %480 = vmatprep.subr.bf16.mxu0 0
    %481 = vmatpush1.bf16.msra.mxu0 0
    %482 = vmatprep.subr.bf16.mxu0 0
    %483 = vmatpush1.bf16.msra.mxu0 0
    %484 = vmatprep.subr.bf16.mxu0 0
    %485 = vmatpush1.bf16.msra.mxu0 0
    %486 = vmatprep.mubr.bf16.mxu0 0
    %487 = vmatmul.mubr.bf16.gmra.mrb[0].mxu0 %v452
    %v488 = vpop.f32.mrb[0].mxu0
    %v489 = vadd.f32 0.0, %v488
    %v490 = vpop.f32.mrb[0].mxu0
    %v491 = vadd.f32 0.0, %v490
    %v492 = vpop.f32.mrb[0].mxu0
    %v493 = vpop.f32.mrb[0].mxu0
    %494 = vdwg.mxu0
    %v496 = vrot.slane %v489, 4
    %v498 = vadd.f32 %v151, %v496
    %v500 = vrot.slane %v491, 6
    %v502 = vadd.f32 %v157, %v500
    %v503 = vxor.u32 %v498, 2147483648
    %v504 = vmul.f32 %v503, 1.442695
    %v505 = vpow.pop %v504
    %v506 = vadd.f32 %v505, 1.0
    %v507 = vrcp.pop %v506
    %v508 = vmul.f32 1.0, %v507
    %v509 = vtanh.pop %v498
    %v511 = vrot.slane %v397, 6
    %v513 = vmul.f32 %v508, %v511
    %515 = vrot.lane.b32.xlu0 %v509, 64
    %v516 = vpop.permute.xlu0 %515
    %v518 = vmul.f32 %v508, %v516
    %520 = vrot.lane.b32.xlu0 %v518, 32
    %v521 = vpop.permute.xlu0 %520
    %v523 = vadd.f32 %v513, %v521
    %v524 = vtanh.pop %v523
    %526 = vrot.lane.b32.xlu0 %v524, 64
    %v527 = vpop.permute.xlu0 %526
    %v529 = vmul.f32 %v508, %v527
    %v530 = vxor.u32 %v502, 2147483648
    %v531 = vmul.f32 %v530, 1.442695
    %v532 = vpow.pop %v531
    %v533 = vadd.f32 %v532, 1.0
    %v534 = vrcp.pop %v533
    %v535 = vmul.f32 1.0, %v534
    %v536 = vtanh.pop %v502
    %v538 = vrot.slane %v424, 2
    %v540 = vmul.f32 %v535, %v538
    %542 = vrot.lane.b32.xlu0 %v536, 64
    %v543 = vpop.permute.xlu0 %542
    %v545 = vmul.f32 %v535, %v543
    %547 = vrot.lane.b32.xlu0 %v545, 32
    %v548 = vpop.permute.xlu0 %547
    %v550 = vadd.f32 %v540, %v548
    %v551 = vtanh.pop %v550
    %553 = vrot.lane.b32.xlu0 %v551, 64
    %v554 = vpop.permute.xlu0 %553
    %v556 = vmul.f32 %v535, %v554
    %558 = vrot.lane.b32.xlu0 %v529, 32
    %v559 = vpop.permute.xlu0 %558
    %vm561 = vcmask 259076
    %562 = vst.msk [vmem:[#allocation2] sm:$0x30] %vm561, %v559
    %564 = vrot.lane.b32.xlu0 %v556, 64
    %v565 = vpop.permute.xlu0 %564
    %vm567 = vcmask 519426
    %568 = vst.msk [vmem:[#allocation2 + $0x8] sm:$0xc] %vm567, %v565
    %v569 = vrot.slane %v556, 6
    %570 = vrot.lane.b32.xlu0 %v569, 64
    %v571 = vpop.permute.xlu0 %570
    %v573 = vsel %vm322, %v559, %v571
    %v574 = vpack.c.bf16 %v573, %v573
    %v576 = vrot.slane %v574, 2
    %v578 = vsel %vm208, %v576, 0
    %580 = vmatprep.subr.bf16.mxu0 %v193
    %581 = vmatpush1.bf16.msra.mxu0 %v192
    %582 = vmatprep.subr.bf16.mxu0 %v195
    %583 = vmatpush1.bf16.msra.mxu0 %v194
    %584 = vmatprep.subr.bf16.mxu0 %v197
    %585 = vmatpush1.bf16.msra.mxu0 %v196
    %586 = vmatprep.subr.bf16.mxu0 %v199
    %587 = vmatpush1.bf16.msra.mxu0 %v198
    %588 = vmatprep.subr.bf16.mxu0 0
    %589 = vmatpush1.bf16.msra.mxu0 0
    %590 = vmatprep.subr.bf16.mxu0 0
    %591 = vmatpush1.bf16.msra.mxu0 0
    %592 = vmatprep.subr.bf16.mxu0 0
    %593 = vmatpush1.bf16.msra.mxu0 0
    %594 = vmatprep.subr.bf16.mxu0 0
    %595 = vmatpush1.bf16.msra.mxu0 0
    %596 = vmatprep.subr.bf16.mxu0 0
    %597 = vmatpush1.bf16.msra.mxu0 0
    %598 = vmatprep.subr.bf16.mxu0 0
    %599 = vmatpush1.bf16.msra.mxu0 0
    %600 = vmatprep.subr.bf16.mxu0 0
    %601 = vmatpush1.bf16.msra.mxu0 0
    %602 = vmatprep.subr.bf16.mxu0 0
    %603 = vmatpush1.bf16.msra.mxu0 0
    %604 = vmatprep.subr.bf16.mxu0 0
    %605 = vmatpush1.bf16.msra.mxu0 0
    %606 = vmatprep.subr.bf16.mxu0 0
    %607 = vmatpush1.bf16.msra.mxu0 0
    %608 = vmatprep.subr.bf16.mxu0 0
    %609 = vmatpush1.bf16.msra.mxu0 0
    %610 = vmatprep.subr.bf16.mxu0 0
    %611 = vmatpush1.bf16.msra.mxu0 0
    %612 = vmatprep.mubr.bf16.mxu0 0
    %613 = vmatmul.mubr.bf16.gmra.mrb[0].mxu0 %v578
    %v614 = vpop.f32.mrb[0].mxu0
    %v615 = vadd.f32 0.0, %v614
    %v616 = vpop.f32.mrb[0].mxu0
    %v617 = vadd.f32 0.0, %v616
    %v618 = vpop.f32.mrb[0].mxu0
    %v619 = vpop.f32.mrb[0].mxu0
    %620 = vdwg.mxu0
    %v622 = vrot.slane %v615, 2
    %v624 = vadd.f32 %v151, %v622
    %v625 = vadd.f32 %v157, %v617
    %v626 = vxor.u32 %v624, 2147483648
    %v627 = vmul.f32 %v626, 1.442695
    %v628 = vpow.pop %v627
    %v629 = vadd.f32 %v628, 1.0
    %v630 = vrcp.pop %v629
    %v631 = vmul.f32 1.0, %v630
    %v632 = vtanh.pop %v624
    %v634 = vrot.slane %v523, 6
    %v636 = vmul.f32 %v631, %v634
    %638 = vrot.lane.b32.xlu0 %v632, 64
    %v639 = vpop.permute.xlu0 %638
    %v641 = vmul.f32 %v631, %v639
    %643 = vrot.lane.b32.xlu0 %v641, 32
    %v644 = vpop.permute.xlu0 %643
    %v646 = vadd.f32 %v636, %v644
    %v647 = vtanh.pop %v646
    %649 = vrot.lane.b32.xlu0 %v647, 64
    %v650 = vpop.permute.xlu0 %649
    %v652 = vmul.f32 %v631, %v650
    %v653 = vxor.u32 %v625, 2147483648
    %v654 = vmul.f32 %v653, 1.442695
    %v655 = vpow.pop %v654
    %v656 = vadd.f32 %v655, 1.0
    %v657 = vrcp.pop %v656
    %v658 = vmul.f32 1.0, %v657
    %v659 = vtanh.pop %v625
    %v661 = vrot.slane %v550, 2
    %v663 = vmul.f32 %v658, %v661
    %665 = vrot.lane.b32.xlu0 %v659, 64
    %v666 = vpop.permute.xlu0 %665
    %v668 = vmul.f32 %v658, %v666
    %670 = vrot.lane.b32.xlu0 %v668, 32
    %v671 = vpop.permute.xlu0 %670
    %v673 = vadd.f32 %v663, %v671
    %v674 = vtanh.pop %v673
    %676 = vrot.lane.b32.xlu0 %v674, 64
    %v677 = vpop.permute.xlu0 %676
    %v679 = vmul.f32 %v658, %v677
    %681 = vrot.lane.b32.xlu0 %v652, 32
    %v682 = vpop.permute.xlu0 %681
    %vm684 = vcmask 261126
    %685 = vst.msk [vmem:[#allocation2] sm:$0xc0] %vm684, %v682
    %687 = vrot.lane.b32.xlu0 %v679, 64
    %v688 = vpop.permute.xlu0 %687
    %vm690 = vcmask 517376
    %691 = vst.msk [vmem:[#allocation2 + $0x8] sm:$0x3] %vm690, %v688
    %v692 = vrot.slane %v679, 2
    %693 = vrot.lane.b32.xlu0 %v692, 64
    %v694 = vpop.permute.xlu0 %693
    %v696 = vsel %vm322, %v682, %v694
    %v697 = vpack.c.bf16 %v696, %v696
    %v699 = vrot.slane %v697, 3
    %v701 = vsel %vm208, %v699, 0
    %703 = vmatprep.subr.bf16.mxu0 %v193
    %704 = vmatpush1.bf16.msra.mxu0 %v192
    %705 = vmatprep.subr.bf16.mxu0 %v195
    %706 = vmatpush1.bf16.msra.mxu0 %v194
    %707 = vmatprep.subr.bf16.mxu0 %v197
    %708 = vmatpush1.bf16.msra.mxu0 %v196
    %709 = vmatprep.subr.bf16.mxu0 %v199
    %710 = vmatpush1.bf16.msra.mxu0 %v198
    %711 = vmatprep.subr.bf16.mxu0 0
    %712 = vmatpush1.bf16.msra.mxu0 0
    %713 = vmatprep.subr.bf16.mxu0 0
    %714 = vmatpush1.bf16.msra.mxu0 0
    %715 = vmatprep.subr.bf16.mxu0 0
    %716 = vmatpush1.bf16.msra.mxu0 0
    %717 = vmatprep.subr.bf16.mxu0 0
    %718 = vmatpush1.bf16.msra.mxu0 0
    %719 = vmatprep.subr.bf16.mxu0 0
    %720 = vmatpush1.bf16.msra.mxu0 0
    %721 = vmatprep.subr.bf16.mxu0 0
    %722 = vmatpush1.bf16.msra.mxu0 0
    %723 = vmatprep.subr.bf16.mxu0 0
    %724 = vmatpush1.bf16.msra.mxu0 0
    %725 = vmatprep.subr.bf16.mxu0 0
    %726 = vmatpush1.bf16.msra.mxu0 0
    %727 = vmatprep.subr.bf16.mxu0 0
    %728 = vmatpush1.bf16.msra.mxu0 0
    %729 = vmatprep.subr.bf16.mxu0 0
    %730 = vmatpush1.bf16.msra.mxu0 0
    %731 = vmatprep.subr.bf16.mxu0 0
    %732 = vmatpush1.bf16.msra.mxu0 0
    %733 = vmatprep.subr.bf16.mxu0 0
    %734 = vmatpush1.bf16.msra.mxu0 0
    %735 = vmatprep.mubr.bf16.mxu0 0
    %736 = vmatmul.mubr.bf16.gmra.mrb[0].mxu0 %v701
    %v737 = vpop.f32.mrb[0].mxu0
    %v738 = vadd.f32 0.0, %v737
    %v739 = vpop.f32.mrb[0].mxu0
    %v740 = vadd.f32 0.0, %v739
    %v741 = vpop.f32.mrb[0].mxu0
    %v742 = vpop.f32.mrb[0].mxu0
    %743 = vdwg.mxu0
    %v744 = vadd.f32 %v155, %v738
    %v746 = vrot.slane %v740, 2
    %v748 = vadd.f32 %v153, %v746
    %v749 = vxor.u32 %v744, 2147483648
    %v750 = vmul.f32 %v749, 1.442695
    %v751 = vpow.pop %v750
    %v752 = vadd.f32 %v751, 1.0
    %v753 = vrcp.pop %v752
    %v754 = vmul.f32 1.0, %v753
    %v755 = vtanh.pop %v744
    %v757 = vrot.slane %v646, 6
    %v759 = vmul.f32 %v754, %v757
    %761 = vrot.lane.b32.xlu0 %v755, 64
    %v762 = vpop.permute.xlu0 %761
    %v764 = vmul.f32 %v754, %v762
    %766 = vrot.lane.b32.xlu0 %v764, 32
    %v767 = vpop.permute.xlu0 %766
    %v769 = vadd.f32 %v759, %v767
    %v770 = vtanh.pop %v769
    %772 = vrot.lane.b32.xlu0 %v770, 64
    %v773 = vpop.permute.xlu0 %772
    %v775 = vmul.f32 %v754, %v773
    %v776 = vxor.u32 %v748, 2147483648
    %v777 = vmul.f32 %v776, 1.442695
    %v778 = vpow.pop %v777
    %v779 = vadd.f32 %v778, 1.0
    %v780 = vrcp.pop %v779
    %v781 = vmul.f32 1.0, %v780
    %v782 = vtanh.pop %v748
    %v784 = vrot.slane %v673, 2
    %v786 = vmul.f32 %v781, %v784
    %788 = vrot.lane.b32.xlu0 %v782, 64
    %v789 = vpop.permute.xlu0 %788
    %v791 = vmul.f32 %v781, %v789
    %793 = vrot.lane.b32.xlu0 %v791, 32
    %v794 = vpop.permute.xlu0 %793
    %v796 = vadd.f32 %v786, %v794
    %v797 = vtanh.pop %v796
    %799 = vrot.lane.b32.xlu0 %v797, 64
    %v800 = vpop.permute.xlu0 %799
    %v802 = vmul.f32 %v781, %v800
    %804 = vrot.lane.b32.xlu0 %v775, 32
    %v805 = vpop.permute.xlu0 %804
    %807 = vst.msk [vmem:[#allocation2 + $0x8] sm:$0x3] %vm310, %v805
    %809 = vrot.lane.b32.xlu0 %v802, 64
    %v810 = vpop.permute.xlu0 %809
    %812 = vst.msk [vmem:[#allocation2] sm:$0xc0] %vm316, %v810
    %v813 = vrot.slane %v802, 6
    %814 = vrot.lane.b32.xlu0 %v813, 64
    %v815 = vpop.permute.xlu0 %814
    %v817 = vsel %vm322, %v805, %v815
    %v818 = vpack.c.bf16 %v817, %v817
    %v820 = vsel %vm208, %v818, 0
    %822 = vmatprep.subr.bf16.mxu0 %v193
    %823 = vmatpush1.bf16.msra.mxu0 %v192
    %824 = vmatprep.subr.bf16.mxu0 %v195
    %825 = vmatpush1.bf16.msra.mxu0 %v194
    %826 = vmatprep.subr.bf16.mxu0 %v197
    %827 = vmatpush1.bf16.msra.mxu0 %v196
    %828 = vmatprep.subr.bf16.mxu0 %v199
    %829 = vmatpush1.bf16.msra.mxu0 %v198
    %830 = vmatprep.subr.bf16.mxu0 0
    %831 = vmatpush1.bf16.msra.mxu0 0
    %832 = vmatprep.subr.bf16.mxu0 0
    %833 = vmatpush1.bf16.msra.mxu0 0
    %834 = vmatprep.subr.bf16.mxu0 0
    %835 = vmatpush1.bf16.msra.mxu0 0
    %836 = vmatprep.subr.bf16.mxu0 0
    %837 = vmatpush1.bf16.msra.mxu0 0
    %838 = vmatprep.subr.bf16.mxu0 0
    %839 = vmatpush1.bf16.msra.mxu0 0
    %840 = vmatprep.subr.bf16.mxu0 0
    %841 = vmatpush1.bf16.msra.mxu0 0
    %842 = vmatprep.subr.bf16.mxu0 0
    %843 = vmatpush1.bf16.msra.mxu0 0
    %844 = vmatprep.subr.bf16.mxu0 0
    %845 = vmatpush1.bf16.msra.mxu0 0
    %846 = vmatprep.subr.bf16.mxu0 0
    %847 = vmatpush1.bf16.msra.mxu0 0
    %848 = vmatprep.subr.bf16.mxu0 0
    %849 = vmatpush1.bf16.msra.mxu0 0
    %850 = vmatprep.subr.bf16.mxu0 0
    %851 = vmatpush1.bf16.msra.mxu0 0
    %852 = vmatprep.subr.bf16.mxu0 0
    %853 = vmatpush1.bf16.msra.mxu0 0
    %854 = vmatprep.mubr.bf16.mxu0 0
    %855 = vmatmul.mubr.bf16.gmra.mrb[0].mxu0 %v820
    %v856 = vpop.f32.mrb[0].mxu0
    %v857 = vadd.f32 0.0, %v856
    %v858 = vpop.f32.mrb[0].mxu0
    %v859 = vadd.f32 0.0, %v858
    %v860 = vpop.f32.mrb[0].mxu0
    %v861 = vpop.f32.mrb[0].mxu0
    %862 = vdwg.mxu0
    %v864 = vrot.slane %v857, 6
    %v866 = vadd.f32 %v155, %v864
    %v868 = vrot.slane %v859, 4
    %v870 = vadd.f32 %v153, %v868
    %v871 = vxor.u32 %v866, 2147483648
    %v872 = vmul.f32 %v871, 1.442695
    %v873 = vpow.pop %v872
    %v874 = vadd.f32 %v873, 1.0
    %v875 = vrcp.pop %v874
    %v876 = vmul.f32 1.0, %v875
    %v877 = vtanh.pop %v866
    %v879 = vrot.slane %v769, 6
    %v881 = vmul.f32 %v876, %v879
    %883 = vrot.lane.b32.xlu0 %v877, 64
    %v884 = vpop.permute.xlu0 %883
    %v886 = vmul.f32 %v876, %v884
    %888 = vrot.lane.b32.xlu0 %v886, 32
    %v889 = vpop.permute.xlu0 %888
    %v891 = vadd.f32 %v881, %v889
    %v892 = vtanh.pop %v891
    %894 = vrot.lane.b32.xlu0 %v892, 64
    %v895 = vpop.permute.xlu0 %894
    %v897 = vmul.f32 %v876, %v895
    %v898 = vxor.u32 %v870, 2147483648
    %v899 = vmul.f32 %v898, 1.442695
    %v900 = vpow.pop %v899
    %v901 = vadd.f32 %v900, 1.0
    %v902 = vrcp.pop %v901
    %v903 = vmul.f32 1.0, %v902
    %v904 = vtanh.pop %v870
    %v906 = vrot.slane %v796, 2
    %v908 = vmul.f32 %v903, %v906
    %910 = vrot.lane.b32.xlu0 %v904, 64
    %v911 = vpop.permute.xlu0 %910
    %v913 = vmul.f32 %v903, %v911
    %915 = vrot.lane.b32.xlu0 %v913, 32
    %v916 = vpop.permute.xlu0 %915
    %v918 = vadd.f32 %v908, %v916
    %v919 = vtanh.pop %v918
    %921 = vrot.lane.b32.xlu0 %v919, 64
    %v922 = vpop.permute.xlu0 %921
    %v924 = vmul.f32 %v903, %v922
    %926 = vrot.lane.b32.xlu0 %v897, 32
    %v927 = vpop.permute.xlu0 %926
    %929 = vst.msk [vmem:[#allocation2 + $0x8] sm:$0xc] %vm435, %v927
    %931 = vrot.lane.b32.xlu0 %v924, 64
    %v932 = vpop.permute.xlu0 %931
    %934 = vst.msk [vmem:[#allocation2] sm:$0x30] %vm441, %v932
    %v935 = vrot.slane %v924, 2
    %936 = vrot.lane.b32.xlu0 %v935, 64
    %v937 = vpop.permute.xlu0 %936
    %v939 = vsel %vm322, %v927, %v937
    %v940 = vpack.c.bf16 %v939, %v939
    %v942 = vrot.slane %v940, 1
    %v944 = vsel %vm208, %v942, 0
    %946 = vmatprep.subr.bf16.mxu0 %v193
    %947 = vmatpush1.bf16.msra.mxu0 %v192
    %948 = vmatprep.subr.bf16.mxu0 %v195
    %949 = vmatpush1.bf16.msra.mxu0 %v194
    %950 = vmatprep.subr.bf16.mxu0 %v197
    %951 = vmatpush1.bf16.msra.mxu0 %v196
    %952 = vmatprep.subr.bf16.mxu0 %v199
    %953 = vmatpush1.bf16.msra.mxu0 %v198
    %954 = vmatprep.subr.bf16.mxu0 0
    %955 = vmatpush1.bf16.msra.mxu0 0
    %956 = vmatprep.subr.bf16.mxu0 0
    %957 = vmatpush1.bf16.msra.mxu0 0
    %958 = vmatprep.subr.bf16.mxu0 0
    %959 = vmatpush1.bf16.msra.mxu0 0
    %960 = vmatprep.subr.bf16.mxu0 0
    %961 = vmatpush1.bf16.msra.mxu0 0
    %962 = vmatprep.subr.bf16.mxu0 0
    %963 = vmatpush1.bf16.msra.mxu0 0
    %964 = vmatprep.subr.bf16.mxu0 0
    %965 = vmatpush1.bf16.msra.mxu0 0
    %966 = vmatprep.subr.bf16.mxu0 0
    %967 = vmatpush1.bf16.msra.mxu0 0
    %968 = vmatprep.subr.bf16.mxu0 0
    %969 = vmatpush1.bf16.msra.mxu0 0
    %970 = vmatprep.subr.bf16.mxu0 0
    %971 = vmatpush1.bf16.msra.mxu0 0
    %972 = vmatprep.subr.bf16.mxu0 0
    %973 = vmatpush1.bf16.msra.mxu0 0
    %974 = vmatprep.subr.bf16.mxu0 0
    %975 = vmatpush1.bf16.msra.mxu0 0
    %976 = vmatprep.subr.bf16.mxu0 0
    %977 = vmatpush1.bf16.msra.mxu0 0
    %978 = vmatprep.mubr.bf16.mxu0 0
    %979 = vmatmul.mubr.bf16.gmra.mrb[0].mxu0 %v944
    %v980 = vpop.f32.mrb[0].mxu0
    %v981 = vadd.f32 0.0, %v980
    %v982 = vpop.f32.mrb[0].mxu0
    %v983 = vadd.f32 0.0, %v982
    %v984 = vpop.f32.mrb[0].mxu0
    %v985 = vpop.f32.mrb[0].mxu0
    %986 = vdwg.mxu0
    %v988 = vrot.slane %v981, 4
    %v990 = vadd.f32 %v155, %v988
    %v992 = vrot.slane %v983, 6
    %v994 = vadd.f32 %v153, %v992
    %v995 = vxor.u32 %v990, 2147483648
    %v996 = vmul.f32 %v995, 1.442695
    %v997 = vpow.pop %v996
    %v998 = vadd.f32 %v997, 1.0
    %v999 = vrcp.pop %v998
    %v1000 = vmul.f32 1.0, %v999
    %v1001 = vtanh.pop %v990
    %v1003 = vrot.slane %v891, 6
    %v1005 = vmul.f32 %v1000, %v1003
    %1007 = vrot.lane.b32.xlu0 %v1001, 64
    %v1008 = vpop.permute.xlu0 %1007
    %v1010 = vmul.f32 %v1000, %v1008
    %1012 = vrot.lane.b32.xlu0 %v1010, 32
    %v1013 = vpop.permute.xlu0 %1012
    %v1015 = vadd.f32 %v1005, %v1013
    %v1016 = vtanh.pop %v1015
    %1018 = vrot.lane.b32.xlu0 %v1016, 64
    %v1019 = vpop.permute.xlu0 %1018
    %v1021 = vmul.f32 %v1000, %v1019
    %v1022 = vxor.u32 %v994, 2147483648
    %v1023 = vmul.f32 %v1022, 1.442695
    %v1024 = vpow.pop %v1023
    %v1025 = vadd.f32 %v1024, 1.0
    %v1026 = vrcp.pop %v1025
    %v1027 = vmul.f32 1.0, %v1026
    %v1028 = vtanh.pop %v994
    %v1030 = vrot.slane %v918, 2
    %v1032 = vmul.f32 %v1027, %v1030
    %1034 = vrot.lane.b32.xlu0 %v1028, 64
    %v1035 = vpop.permute.xlu0 %1034
    %v1037 = vmul.f32 %v1027, %v1035
    %1039 = vrot.lane.b32.xlu0 %v1037, 32
    %v1040 = vpop.permute.xlu0 %1039
    %v1042 = vadd.f32 %v1032, %v1040
    %v1043 = vtanh.pop %v1042
    %1045 = vrot.lane.b32.xlu0 %v1043, 64
    %v1046 = vpop.permute.xlu0 %1045
    %v1048 = vmul.f32 %v1027, %v1046
    %1050 = vrot.lane.b32.xlu0 %v1021, 32
    %v1051 = vpop.permute.xlu0 %1050
    %1053 = vst.msk [vmem:[#allocation2 + $0x8] sm:$0x30] %vm561, %v1051
    %1055 = vrot.lane.b32.xlu0 %v1048, 64
    %v1056 = vpop.permute.xlu0 %1055
    %1058 = vst.msk [vmem:[#allocation2] sm:$0xc] %vm567, %v1056
    %v1059 = vrot.slane %v1048, 6
    %1060 = vrot.lane.b32.xlu0 %v1059, 64
    %v1061 = vpop.permute.xlu0 %1060
    %v1063 = vsel %vm322, %v1051, %v1061
    %v1064 = vpack.c.bf16 %v1063, %v1063
    %v1066 = vrot.slane %v1064, 2
    %v1068 = vsel %vm208, %v1066, 0
    %1070 = vmatprep.subr.bf16.mxu0 %v193
    %1071 = vmatpush1.bf16.msra.mxu0 %v192
    %1072 = vmatprep.subr.bf16.mxu0 %v195
    %1073 = vmatpush1.bf16.msra.mxu0 %v194
    %1074 = vmatprep.subr.bf16.mxu0 %v197
    %1075 = vmatpush1.bf16.msra.mxu0 %v196
    %1076 = vmatprep.subr.bf16.mxu0 %v199
    %1077 = vmatpush1.bf16.msra.mxu0 %v198
    %1078 = vmatprep.subr.bf16.mxu0 0
    %1079 = vmatpush1.bf16.msra.mxu0 0
    %1080 = vmatprep.subr.bf16.mxu0 0
    %1081 = vmatpush1.bf16.msra.mxu0 0
    %1082 = vmatprep.subr.bf16.mxu0 0
    %1083 = vmatpush1.bf16.msra.mxu0 0
    %1084 = vmatprep.subr.bf16.mxu0 0
    %1085 = vmatpush1.bf16.msra.mxu0 0
    %1086 = vmatprep.subr.bf16.mxu0 0
    %1087 = vmatpush1.bf16.msra.mxu0 0
    %1088 = vmatprep.subr.bf16.mxu0 0
    %1089 = vmatpush1.bf16.msra.mxu0 0
    %1090 = vmatprep.subr.bf16.mxu0 0
    %1091 = vmatpush1.bf16.msra.mxu0 0
    %1092 = vmatprep.subr.bf16.mxu0 0
    %1093 = vmatpush1.bf16.msra.mxu0 0
    %1094 = vmatprep.subr.bf16.mxu0 0
    %1095 = vmatpush1.bf16.msra.mxu0 0
    %1096 = vmatprep.subr.bf16.mxu0 0
    %1097 = vmatpush1.bf16.msra.mxu0 0
    %1098 = vmatprep.subr.bf16.mxu0 0
    %1099 = vmatpush1.bf16.msra.mxu0 0
    %1100 = vmatprep.subr.bf16.mxu0 0
    %1101 = vmatpush1.bf16.msra.mxu0 0
    %1102 = vmatprep.mubr.bf16.mxu0 0
    %1103 = vmatmul.mubr.bf16.gmra.mrb[0].mxu0 %v1068
    %v1104 = vpop.f32.mrb[0].mxu0
    %v1105 = vadd.f32 0.0, %v1104
    %v1106 = vpop.f32.mrb[0].mxu0
    %v1107 = vadd.f32 0.0, %v1106
    %v1108 = vpop.f32.mrb[0].mxu0
    %v1109 = vpop.f32.mrb[0].mxu0
    %1110 = vdwg.mxu0
    %v1112 = vrot.slane %v1105, 2
    %v1114 = vadd.f32 %v155, %v1112
    %v1115 = vadd.f32 %v153, %v1107
    %v1116 = vxor.u32 %v1114, 2147483648
    %v1117 = vmul.f32 %v1116, 1.442695
    %v1118 = vpow.pop %v1117
    %v1119 = vadd.f32 %v1118, 1.0
    %v1120 = vrcp.pop %v1119
    %v1121 = vmul.f32 1.0, %v1120
    %v1122 = vtanh.pop %v1114
    %v1124 = vrot.slane %v1015, 6
    %v1126 = vmul.f32 %v1121, %v1124
    %1128 = vrot.lane.b32.xlu0 %v1122, 64
    %v1129 = vpop.permute.xlu0 %1128
    %v1131 = vmul.f32 %v1121, %v1129
    %1133 = vrot.lane.b32.xlu0 %v1131, 32
    %v1134 = vpop.permute.xlu0 %1133
    %v1136 = vadd.f32 %v1126, %v1134
    %v1137 = vtanh.pop %v1136
    %1139 = vrot.lane.b32.xlu0 %v1137, 64
    %v1140 = vpop.permute.xlu0 %1139
    %v1142 = vmul.f32 %v1121, %v1140
    %v1143 = vxor.u32 %v1115, 2147483648
    %v1144 = vmul.f32 %v1143, 1.442695
    %v1145 = vpow.pop %v1144
    %v1146 = vadd.f32 %v1145, 1.0
    %v1147 = vrcp.pop %v1146
    %v1148 = vmul.f32 1.0, %v1147
    %v1149 = vtanh.pop %v1115
    %v1151 = vrot.slane %v1042, 2
    %v1153 = vmul.f32 %v1148, %v1151
    %1155 = vrot.lane.b32.xlu0 %v1149, 64
    %v1156 = vpop.permute.xlu0 %1155
    %v1158 = vmul.f32 %v1148, %v1156
    %1160 = vrot.lane.b32.xlu0 %v1158, 32
    %v1161 = vpop.permute.xlu0 %1160
    %v1163 = vadd.f32 %v1153, %v1161
    %v1164 = vtanh.pop %v1163
    %1166 = vrot.lane.b32.xlu0 %v1164, 64
    %v1167 = vpop.permute.xlu0 %1166
    %v1169 = vmul.f32 %v1148, %v1167
    %1171 = vrot.lane.b32.xlu0 %v1142, 32
    %v1172 = vpop.permute.xlu0 %1171
    %1174 = vst.msk [vmem:[#allocation2 + $0x8] sm:$0xc0] %vm684, %v1172
    %1176 = vrot.lane.b32.xlu0 %v1169, 64
    %v1177 = vpop.permute.xlu0 %1176
    %1179 = vst.msk [vmem:[#allocation2] sm:$0x3] %vm690, %v1177
    %v1180 = vld [vmem:[#allocation2] sm:$0xff]
    %v1181 = vld [vmem:[#allocation2 + $0x8] sm:$0xff]
    %v1182 = vpack.c.bf16 %v1181, %v1180
    %v1183 = vld [vmem:[%s4] sm:$0xff]
    %v1184 = vld [vmem:[%s4 + $0x8] sm:$0xff]
    %v1185 = vld [vmem:[%s4 + $0x10] sm:$0xff]
    %v1186 = vld [vmem:[%s4 + $0x18] sm:$0xff]
    %v1187 = vld [vmem:[%s4 + $0x20] sm:$0xff]
    %v1188 = vld [vmem:[%s4 + $0x28] sm:$0xff]
    %v1189 = vld [vmem:[%s4 + $0x30] sm:$0xff]
    %v1190 = vld [vmem:[%s4 + $0x38] sm:$0xff]
    %v1191 = vld [vmem:[%s5] sm:$0x3]
    %v1193 = vlaneseq
    %v1194 = vshrl.u32 %v1193, 7
    %v1195 = vsub.s32 0, %v1194
    %v1196 = vrot.slane %v1191, %v1195
    %v1197 = vlaneseq
    %v1198 = vshrl.u32 %v1197, 7
    %v1199 = vsub.s32 1, %v1198
    %v1200 = vrot.slane %v1191, %v1199
    %v1211 = vunpack.c.l.b16 %v1183
    %v1212 = vunpack.c.h.b16 %v1183
    %v1213 = vunpack.c.l.b16 %v1184
    %v1214 = vunpack.c.h.b16 %v1184
    %v1215 = vunpack.c.l.b16 %v1185
    %v1216 = vunpack.c.h.b16 %v1185
    %v1217 = vunpack.c.l.b16 %v1186
    %v1218 = vunpack.c.h.b16 %v1186
    %v1219 = vunpack.c.l.b16 %v1187
    %v1220 = vunpack.c.h.b16 %v1187
    %v1221 = vunpack.c.l.b16 %v1188
    %v1222 = vunpack.c.h.b16 %v1188
    %v1223 = vunpack.c.l.b16 %v1189
    %v1224 = vunpack.c.h.b16 %v1189
    %v1225 = vunpack.c.l.b16 %v1190
    %v1226 = vunpack.c.h.b16 %v1190
    %v1227 = vpack.c.b16 %v1213, %v1211
    %v1228 = vpack.c.b16 %v1214, %v1212
    %v1229 = vpack.c.b16 %v1217, %v1215
    %v1230 = vpack.c.b16 %v1218, %v1216
    %v1231 = vpack.c.b16 %v1221, %v1219
    %v1232 = vpack.c.b16 %v1222, %v1220
    %v1233 = vpack.c.b16 %v1225, %v1223
    %v1234 = vpack.c.b16 %v1226, %v1224
    %v1244 = vsel %vm208, %v1182, 0
    %1246 = vmatprep.subr.bf16.mxu0 %v1228
    %1247 = vmatpush1.bf16.msra.mxu0 %v1227
    %1248 = vmatprep.subr.bf16.mxu0 %v1230
    %1249 = vmatpush1.bf16.msra.mxu0 %v1229
    %1250 = vmatprep.subr.bf16.mxu0 %v1232
    %1251 = vmatpush1.bf16.msra.mxu0 %v1231
    %1252 = vmatprep.subr.bf16.mxu0 %v1234
    %1253 = vmatpush1.bf16.msra.mxu0 %v1233
    %1254 = vmatprep.subr.bf16.mxu0 0
    %1255 = vmatpush1.bf16.msra.mxu0 0
    %1256 = vmatprep.subr.bf16.mxu0 0
    %1257 = vmatpush1.bf16.msra.mxu0 0
    %1258 = vmatprep.subr.bf16.mxu0 0
    %1259 = vmatpush1.bf16.msra.mxu0 0
    %1260 = vmatprep.subr.bf16.mxu0 0
    %1261 = vmatpush1.bf16.msra.mxu0 0
    %1262 = vmatprep.subr.bf16.mxu0 0
    %1263 = vmatpush1.bf16.msra.mxu0 0
    %1264 = vmatprep.subr.bf16.mxu0 0
    %1265 = vmatpush1.bf16.msra.mxu0 0
    %1266 = vmatprep.subr.bf16.mxu0 0
    %1267 = vmatpush1.bf16.msra.mxu0 0
    %1268 = vmatprep.subr.bf16.mxu0 0
    %1269 = vmatpush1.bf16.msra.mxu0 0
    %1270 = vmatprep.subr.bf16.mxu0 0
    %1271 = vmatpush1.bf16.msra.mxu0 0
    %1272 = vmatprep.subr.bf16.mxu0 0
    %1273 = vmatpush1.bf16.msra.mxu0 0
    %1274 = vmatprep.subr.bf16.mxu0 0
    %1275 = vmatpush1.bf16.msra.mxu0 0
    %1276 = vmatprep.subr.bf16.mxu0 0
    %1277 = vmatpush1.bf16.msra.mxu0 0
    %1278 = vmatprep.mubr.bf16.mxu0 0
    %1279 = vmatmul.mubr.bf16.gmra.mrb[0].mxu0 %v1244
    %v1280 = vpop.f32.mrb[0].mxu0
    %v1281 = vadd.f32 %v1196, %v1280
    %v1282 = vpop.f32.mrb[0].mxu0
    %v1283 = vpop.f32.mrb[0].mxu0
    %v1284 = vadd.f32 %v1196, %v1283
    %v1285 = vpop.f32.mrb[0].mxu0
    %v1286 = vadd.f32 %v1200, %v1285
    %1287 = vdwg.mxu0
    %v1288 = vld [vmem:[%s6] sm:$0xf]
    %v1289 = vld [vmem:[%s6 + $0x4] sm:$0xf]
    %v1290 = vld [vmem:[%s6 + $0x8] sm:$0xf]
    %v1291 = vld [vmem:[%s6 + $0xc] sm:$0xf]
    %v1296 = vunpack.c.l.b16 %v1288
    %v1297 = vunpack.c.l.b16 %v1289
    %v1298 = vunpack.c.l.b16 %v1290
    %v1299 = vunpack.c.l.b16 %v1291
    %v1300 = vpack.c.b16 %v1297, %v1296
    %v1301 = vpack.c.b16 %v1299, %v1298
    %v1305 = vsel %vm322, 0, 0
    %1307 = vmatprep.subr.bf16.mxu0 0
    %1308 = vmatpush1.bf16.msra.mxu0 %v1300
    %1309 = vmatprep.subr.bf16.mxu0 0
    %1310 = vmatpush1.bf16.msra.mxu0 %v1301
    %1311 = vmatprep.subr.bf16.mxu0 0
    %1312 = vmatpush1.bf16.msra.mxu0 0
    %1313 = vmatprep.subr.bf16.mxu0 0
    %1314 = vmatpush1.bf16.msra.mxu0 0
    %1315 = vmatprep.subr.bf16.mxu0 0
    %1316 = vmatpush1.bf16.msra.mxu0 0
    %1317 = vmatprep.subr.bf16.mxu0 0
    %1318 = vmatpush1.bf16.msra.mxu0 0
    %1319 = vmatprep.subr.bf16.mxu0 0
    %1320 = vmatpush1.bf16.msra.mxu0 0
    %1321 = vmatprep.subr.bf16.mxu0 0
    %1322 = vmatpush1.bf16.msra.mxu0 0
    %1323 = vmatprep.subr.bf16.mxu0 0
    %1324 = vmatpush1.bf16.msra.mxu0 0
    %1325 = vmatprep.subr.bf16.mxu0 0
    %1326 = vmatpush1.bf16.msra.mxu0 0
    %1327 = vmatprep.subr.bf16.mxu0 0
    %1328 = vmatpush1.bf16.msra.mxu0 0
    %1329 = vmatprep.subr.bf16.mxu0 0
    %1330 = vmatpush1.bf16.msra.mxu0 0
    %1331 = vmatprep.subr.bf16.mxu0 0
    %1332 = vmatpush1.bf16.msra.mxu0 0
    %1333 = vmatprep.subr.bf16.mxu0 0
    %1334 = vmatpush1.bf16.msra.mxu0 0
    %1335 = vmatprep.subr.bf16.mxu0 0
    %1336 = vmatpush1.bf16.msra.mxu0 0
    %1337 = vmatprep.subr.bf16.mxu0 0
    %1338 = vmatpush1.bf16.msra.mxu0 0
    %1339 = vmatprep.mubr.bf16.mxu0 0
    %1340 = vmatmul.mubr.bf16.gmra.mrb[0].mxu0 %v1305
    %v1341 = vpop.f32.mrb[0].mxu0
    %v1342 = vadd.f32 0.0, %v1341
    %v1343 = vpop.f32.mrb[0].mxu0
    %v1344 = vpop.f32.mrb[0].mxu0
    %v1345 = vpop.f32.mrb[0].mxu0
    %1346 = vdwg.mxu0
    %v1347 = vadd.f32 %v1281, %v1342
    %v1348 = vxor.u32 %v1347, 2147483648
    %v1349 = vmul.f32 %v1348, 1.442695
    %v1350 = vpow.pop %v1349
    %v1351 = vadd.f32 %v1350, 1.0
    %v1352 = vrcp.pop %v1351
    %v1353 = vmul.f32 1.0, %v1352
    %v1354 = vtanh.pop %v1347
    %v1355 = vmul.f32 %v1353, 0.0
    %1357 = vrot.lane.b32.xlu0 %v1354, 64
    %v1358 = vpop.permute.xlu0 %1357
    %v1360 = vmul.f32 %v1353, %v1358
    %1362 = vrot.lane.b32.xlu0 %v1360, 32
    %v1363 = vpop.permute.xlu0 %1362
    %v1365 = vadd.f32 %v1355, %v1363
    %v1366 = vtanh.pop %v1365
    %1368 = vrot.lane.b32.xlu0 %v1366, 64
    %v1369 = vpop.permute.xlu0 %1368
    %v1371 = vmul.f32 %v1353, %v1369
    %v1372 = vpack.c.bf16 %v1371, %v1371
    %1374 = vrot.lane.b32.xlu0 %v1372, 32
    %v1375 = vpop.permute.xlu0 %1374
    %v1377 = vsel %vm322, %v1375, 0
    %1379 = vmatprep.subr.bf16.mxu0 0
    %1380 = vmatpush1.bf16.msra.mxu0 %v1300
    %1381 = vmatprep.subr.bf16.mxu0 0
    %1382 = vmatpush1.bf16.msra.mxu0 %v1301
    %1383 = vmatprep.subr.bf16.mxu0 0
    %1384 = vmatpush1.bf16.msra.mxu0 0
    %1385 = vmatprep.subr.bf16.mxu0 0
    %1386 = vmatpush1.bf16.msra.mxu0 0
    %1387 = vmatprep.subr.bf16.mxu0 0
    %1388 = vmatpush1.bf16.msra.mxu0 0
    %1389 = vmatprep.subr.bf16.mxu0 0
    %1390 = vmatpush1.bf16.msra.mxu0 0
    %1391 = vmatprep.subr.bf16.mxu0 0
    %1392 = vmatpush1.bf16.msra.mxu0 0
    %1393 = vmatprep.subr.bf16.mxu0 0
    %1394 = vmatpush1.bf16.msra.mxu0 0
    %1395 = vmatprep.subr.bf16.mxu0 0
    %1396 = vmatpush1.bf16.msra.mxu0 0
    %1397 = vmatprep.subr.bf16.mxu0 0
    %1398 = vmatpush1.bf16.msra.mxu0 0
    %1399 = vmatprep.subr.bf16.mxu0 0
    %1400 = vmatpush1.bf16.msra.mxu0 0
    %1401 = vmatprep.subr.bf16.mxu0 0
    %1402 = vmatpush1.bf16.msra.mxu0 0
    %1403 = vmatprep.subr.bf16.mxu0 0
    %1404 = vmatpush1.bf16.msra.mxu0 0
    %1405 = vmatprep.subr.bf16.mxu0 0
    %1406 = vmatpush1.bf16.msra.mxu0 0
    %1407 = vmatprep.subr.bf16.mxu0 0
    %1408 = vmatpush1.bf16.msra.mxu0 0
    %1409 = vmatprep.subr.bf16.mxu0 0
    %1410 = vmatpush1.bf16.msra.mxu0 0
    %1411 = vmatprep.mubr.bf16.mxu0 0
    %1412 = vmatmul.mubr.bf16.gmra.mrb[0].mxu0 %v1377
    %v1413 = vpop.f32.mrb[0].mxu0
    %v1414 = vadd.f32 0.0, %v1413
    %v1415 = vpop.f32.mrb[0].mxu0
    %v1416 = vpop.f32.mrb[0].mxu0
    %v1417 = vpop.f32.mrb[0].mxu0
    %1418 = vdwg.mxu0
    %v1420 = vrot.slane %v1414, 6
    %v1422 = vadd.f32 %v1281, %v1420
    %v1423 = vxor.u32 %v1422, 2147483648
    %v1424 = vmul.f32 %v1423, 1.442695
    %v1425 = vpow.pop %v1424
    %v1426 = vadd.f32 %v1425, 1.0
    %v1427 = vrcp.pop %v1426
    %v1428 = vmul.f32 1.0, %v1427
    %v1429 = vtanh.pop %v1422
    %v1431 = vrot.slane %v1365, 6
    %v1433 = vmul.f32 %v1428, %v1431
    %1435 = vrot.lane.b32.xlu0 %v1429, 64
    %v1436 = vpop.permute.xlu0 %1435
    %v1438 = vmul.f32 %v1428, %v1436
    %1440 = vrot.lane.b32.xlu0 %v1438, 32
    %v1441 = vpop.permute.xlu0 %1440
    %v1443 = vadd.f32 %v1433, %v1441
    %v1444 = vtanh.pop %v1443
    %1446 = vrot.lane.b32.xlu0 %v1444, 64
    %v1447 = vpop.permute.xlu0 %1446
    %v1449 = vmul.f32 %v1428, %v1447
    %v1450 = vpack.c.bf16 %v1449, %v1449
    %v1452 = vrot.slane %v1450, 1
    %1453 = vrot.lane.b32.xlu0 %v1452, 32
    %v1454 = vpop.permute.xlu0 %1453
    %v1456 = vsel %vm322, %v1454, 0
    %1458 = vmatprep.subr.bf16.mxu0 0
    %1459 = vmatpush1.bf16.msra.mxu0 %v1300
    %1460 = vmatprep.subr.bf16.mxu0 0
    %1461 = vmatpush1.bf16.msra.mxu0 %v1301
    %1462 = vmatprep.subr.bf16.mxu0 0
    %1463 = vmatpush1.bf16.msra.mxu0 0
    %1464 = vmatprep.subr.bf16.mxu0 0
    %1465 = vmatpush1.bf16.msra.mxu0 0
    %1466 = vmatprep.subr.bf16.mxu0 0
    %1467 = vmatpush1.bf16.msra.mxu0 0
    %1468 = vmatprep.subr.bf16.mxu0 0
    %1469 = vmatpush1.bf16.msra.mxu0 0
    %1470 = vmatprep.subr.bf16.mxu0 0
    %1471 = vmatpush1.bf16.msra.mxu0 0
    %1472 = vmatprep.subr.bf16.mxu0 0
    %1473 = vmatpush1.bf16.msra.mxu0 0
    %1474 = vmatprep.subr.bf16.mxu0 0
    %1475 = vmatpush1.bf16.msra.mxu0 0
    %1476 = vmatprep.subr.bf16.mxu0 0
    %1477 = vmatpush1.bf16.msra.mxu0 0
    %1478 = vmatprep.subr.bf16.mxu0 0
    %1479 = vmatpush1.bf16.msra.mxu0 0
    %1480 = vmatprep.subr.bf16.mxu0 0
    %1481 = vmatpush1.bf16.msra.mxu0 0
    %1482 = vmatprep.subr.bf16.mxu0 0
    %1483 = vmatpush1.bf16.msra.mxu0 0
    %1484 = vmatprep.subr.bf16.mxu0 0
    %1485 = vmatpush1.bf16.msra.mxu0 0
    %1486 = vmatprep.subr.bf16.mxu0 0
    %1487 = vmatpush1.bf16.msra.mxu0 0
    %1488 = vmatprep.subr.bf16.mxu0 0
    %1489 = vmatpush1.bf16.msra.mxu0 0
    %1490 = vmatprep.mubr.bf16.mxu0 0
    %1491 = vmatmul.mubr.bf16.gmra.mrb[0].mxu0 %v1456
    %v1492 = vpop.f32.mrb[0].mxu0
    %v1493 = vadd.f32 0.0, %v1492
    %v1494 = vpop.f32.mrb[0].mxu0
    %v1495 = vpop.f32.mrb[0].mxu0
    %v1496 = vpop.f32.mrb[0].mxu0
    %1497 = vdwg.mxu0
    %v1499 = vrot.slane %v1493, 4
    %v1501 = vadd.f32 %v1281, %v1499
    %v1502 = vxor.u32 %v1501, 2147483648
    %v1503 = vmul.f32 %v1502, 1.442695
    %v1504 = vpow.pop %v1503
    %v1505 = vadd.f32 %v1504, 1.0
    %v1506 = vrcp.pop %v1505
    %v1507 = vmul.f32 1.0, %v1506
    %v1508 = vtanh.pop %v1501
    %v1510 = vrot.slane %v1443, 6
    %v1512 = vmul.f32 %v1507, %v1510
    %1514 = vrot.lane.b32.xlu0 %v1508, 64
    %v1515 = vpop.permute.xlu0 %1514
    %v1517 = vmul.f32 %v1507, %v1515
    %1519 = vrot.lane.b32.xlu0 %v1517, 32
    %v1520 = vpop.permute.xlu0 %1519
    %v1522 = vadd.f32 %v1512, %v1520
    %v1523 = vtanh.pop %v1522
    %1525 = vrot.lane.b32.xlu0 %v1523, 64
    %v1526 = vpop.permute.xlu0 %1525
    %v1528 = vmul.f32 %v1507, %v1526
    %v1529 = vpack.c.bf16 %v1528, %v1528
    %v1531 = vrot.slane %v1529, 2
    %1532 = vrot.lane.b32.xlu0 %v1531, 32
    %v1533 = vpop.permute.xlu0 %1532
    %v1535 = vsel %vm322, %v1533, 0
    %1537 = vmatprep.subr.bf16.mxu0 0
    %1538 = vmatpush1.bf16.msra.mxu0 %v1300
    %1539 = vmatprep.subr.bf16.mxu0 0
    %1540 = vmatpush1.bf16.msra.mxu0 %v1301
    %1541 = vmatprep.subr.bf16.mxu0 0
    %1542 = vmatpush1.bf16.msra.mxu0 0
    %1543 = vmatprep.subr.bf16.mxu0 0
    %1544 = vmatpush1.bf16.msra.mxu0 0
    %1545 = vmatprep.subr.bf16.mxu0 0
    %1546 = vmatpush1.bf16.msra.mxu0 0
    %1547 = vmatprep.subr.bf16.mxu0 0
    %1548 = vmatpush1.bf16.msra.mxu0 0
    %1549 = vmatprep.subr.bf16.mxu0 0
    %1550 = vmatpush1.bf16.msra.mxu0 0
    %1551 = vmatprep.subr.bf16.mxu0 0
    %1552 = vmatpush1.bf16.msra.mxu0 0
    %1553 = vmatprep.subr.bf16.mxu0 0
    %1554 = vmatpush1.bf16.msra.mxu0 0
    %1555 = vmatprep.subr.bf16.mxu0 0
    %1556 = vmatpush1.bf16.msra.mxu0 0
    %1557 = vmatprep.subr.bf16.mxu0 0
    %1558 = vmatpush1.bf16.msra.mxu0 0
    %1559 = vmatprep.subr.bf16.mxu0 0
    %1560 = vmatpush1.bf16.msra.mxu0 0
    %1561 = vmatprep.subr.bf16.mxu0 0
    %1562 = vmatpush1.bf16.msra.mxu0 0
    %1563 = vmatprep.subr.bf16.mxu0 0
    %1564 = vmatpush1.bf16.msra.mxu0 0
    %1565 = vmatprep.subr.bf16.mxu0 0
    %1566 = vmatpush1.bf16.msra.mxu0 0
    %1567 = vmatprep.subr.bf16.mxu0 0
    %1568 = vmatpush1.bf16.msra.mxu0 0
    %1569 = vmatprep.mubr.bf16.mxu0 0
    %1570 = vmatmul.mubr.bf16.gmra.mrb[0].mxu0 %v1535
    %v1571 = vpop.f32.mrb[0].mxu0
    %v1572 = vadd.f32 0.0, %v1571
    %v1573 = vpop.f32.mrb[0].mxu0
    %v1574 = vpop.f32.mrb[0].mxu0
    %v1575 = vpop.f32.mrb[0].mxu0
    %1576 = vdwg.mxu0
    %v1578 = vrot.slane %v1572, 2
    %v1580 = vadd.f32 %v1281, %v1578
    %v1581 = vxor.u32 %v1580, 2147483648
    %v1582 = vmul.f32 %v1581, 1.442695
    %v1583 = vpow.pop %v1582
    %v1584 = vadd.f32 %v1583, 1.0
    %v1585 = vrcp.pop %v1584
    %v1586 = vmul.f32 1.0, %v1585
    %v1587 = vtanh.pop %v1580
    %v1589 = vrot.slane %v1522, 6
    %v1591 = vmul.f32 %v1586, %v1589
    %1593 = vrot.lane.b32.xlu0 %v1587, 64
    %v1594 = vpop.permute.xlu0 %1593
    %v1596 = vmul.f32 %v1586, %v1594
    %1598 = vrot.lane.b32.xlu0 %v1596, 32
    %v1599 = vpop.permute.xlu0 %1598
    %v1601 = vadd.f32 %v1591, %v1599
    %v1602 = vtanh.pop %v1601
    %1604 = vrot.lane.b32.xlu0 %v1602, 64
    %v1605 = vpop.permute.xlu0 %1604
    %v1607 = vmul.f32 %v1586, %v1605
    %v1608 = vpack.c.bf16 %v1607, %v1607
    %v1610 = vrot.slane %v1608, 3
    %1611 = vrot.lane.b32.xlu0 %v1610, 32
    %v1612 = vpop.permute.xlu0 %1611
    %v1614 = vsel %vm322, %v1612, 0
    %1616 = vmatprep.subr.bf16.mxu0 0
    %1617 = vmatpush1.bf16.msra.mxu0 %v1300
    %1618 = vmatprep.subr.bf16.mxu0 0
    %1619 = vmatpush1.bf16.msra.mxu0 %v1301
    %1620 = vmatprep.subr.bf16.mxu0 0
    %1621 = vmatpush1.bf16.msra.mxu0 0
    %1622 = vmatprep.subr.bf16.mxu0 0
    %1623 = vmatpush1.bf16.msra.mxu0 0
    %1624 = vmatprep.subr.bf16.mxu0 0
    %1625 = vmatpush1.bf16.msra.mxu0 0
    %1626 = vmatprep.subr.bf16.mxu0 0
    %1627 = vmatpush1.bf16.msra.mxu0 0
    %1628 = vmatprep.subr.bf16.mxu0 0
    %1629 = vmatpush1.bf16.msra.mxu0 0
    %1630 = vmatprep.subr.bf16.mxu0 0
    %1631 = vmatpush1.bf16.msra.mxu0 0
    %1632 = vmatprep.subr.bf16.mxu0 0
    %1633 = vmatpush1.bf16.msra.mxu0 0
    %1634 = vmatprep.subr.bf16.mxu0 0
    %1635 = vmatpush1.bf16.msra.mxu0 0
    %1636 = vmatprep.subr.bf16.mxu0 0
    %1637 = vmatpush1.bf16.msra.mxu0 0
    %1638 = vmatprep.subr.bf16.mxu0 0
    %1639 = vmatpush1.bf16.msra.mxu0 0
    %1640 = vmatprep.subr.bf16.mxu0 0
    %1641 = vmatpush1.bf16.msra.mxu0 0
    %1642 = vmatprep.subr.bf16.mxu0 0
    %1643 = vmatpush1.bf16.msra.mxu0 0
    %1644 = vmatprep.subr.bf16.mxu0 0
    %1645 = vmatpush1.bf16.msra.mxu0 0
    %1646 = vmatprep.subr.bf16.mxu0 0
    %1647 = vmatpush1.bf16.msra.mxu0 0
    %1648 = vmatprep.mubr.bf16.mxu0 0
    %1649 = vmatmul.mubr.bf16.gmra.mrb[0].mxu0 %v1614
    %v1650 = vpop.f32.mrb[0].mxu0
    %v1651 = vadd.f32 0.0, %v1650
    %v1652 = vpop.f32.mrb[0].mxu0
    %v1653 = vpop.f32.mrb[0].mxu0
    %v1654 = vpop.f32.mrb[0].mxu0
    %1655 = vdwg.mxu0
    %v1656 = vadd.f32 %v1284, %v1651
    %v1657 = vxor.u32 %v1656, 2147483648
    %v1658 = vmul.f32 %v1657, 1.442695
    %v1659 = vpow.pop %v1658
    %v1660 = vadd.f32 %v1659, 1.0
    %v1661 = vrcp.pop %v1660
    %v1662 = vmul.f32 1.0, %v1661
    %v1663 = vtanh.pop %v1656
    %v1665 = vrot.slane %v1601, 6
    %v1667 = vmul.f32 %v1662, %v1665
    %1669 = vrot.lane.b32.xlu0 %v1663, 64
    %v1670 = vpop.permute.xlu0 %1669
    %v1672 = vmul.f32 %v1662, %v1670
    %1674 = vrot.lane.b32.xlu0 %v1672, 32
    %v1675 = vpop.permute.xlu0 %1674
    %v1677 = vadd.f32 %v1667, %v1675
    %v1678 = vtanh.pop %v1677
    %1680 = vrot.lane.b32.xlu0 %v1678, 64
    %v1681 = vpop.permute.xlu0 %1680
    %v1683 = vmul.f32 %v1662, %v1681
    %v1684 = vpack.c.bf16 %v1683, %v1683
    %1686 = vrot.lane.b32.xlu0 %v1684, 32
    %v1687 = vpop.permute.xlu0 %1686
    %v1689 = vsel %vm322, %v1687, 0
    %1691 = vmatprep.subr.bf16.mxu0 0
    %1692 = vmatpush1.bf16.msra.mxu0 %v1300
    %1693 = vmatprep.subr.bf16.mxu0 0
    %1694 = vmatpush1.bf16.msra.mxu0 %v1301
    %1695 = vmatprep.subr.bf16.mxu0 0
    %1696 = vmatpush1.bf16.msra.mxu0 0
    %1697 = vmatprep.subr.bf16.mxu0 0
    %1698 = vmatpush1.bf16.msra.mxu0 0
    %1699 = vmatprep.subr.bf16.mxu0 0
    %1700 = vmatpush1.bf16.msra.mxu0 0
    %1701 = vmatprep.subr.bf16.mxu0 0
    %1702 = vmatpush1.bf16.msra.mxu0 0
    %1703 = vmatprep.subr.bf16.mxu0 0
    %1704 = vmatpush1.bf16.msra.mxu0 0
    %1705 = vmatprep.subr.bf16.mxu0 0
    %1706 = vmatpush1.bf16.msra.mxu0 0
    %1707 = vmatprep.subr.bf16.mxu0 0
    %1708 = vmatpush1.bf16.msra.mxu0 0
    %1709 = vmatprep.subr.bf16.mxu0 0
    %1710 = vmatpush1.bf16.msra.mxu0 0
    %1711 = vmatprep.subr.bf16.mxu0 0
    %1712 = vmatpush1.bf16.msra.mxu0 0
    %1713 = vmatprep.subr.bf16.mxu0 0
    %1714 = vmatpush1.bf16.msra.mxu0 0
    %1715 = vmatprep.subr.bf16.mxu0 0
    %1716 = vmatpush1.bf16.msra.mxu0 0
    %1717 = vmatprep.subr.bf16.mxu0 0
    %1718 = vmatpush1.bf16.msra.mxu0 0
    %1719 = vmatprep.subr.bf16.mxu0 0
    %1720 = vmatpush1.bf16.msra.mxu0 0
    %1721 = vmatprep.subr.bf16.mxu0 0
    %1722 = vmatpush1.bf16.msra.mxu0 0
    %1723 = vmatprep.mubr.bf16.mxu0 0
    %1724 = vmatmul.mubr.bf16.gmra.mrb[0].mxu0 %v1689
    %v1725 = vpop.f32.mrb[0].mxu0
    %v1726 = vadd.f32 0.0, %v1725
    %v1727 = vpop.f32.mrb[0].mxu0
    %v1728 = vpop.f32.mrb[0].mxu0
    %v1729 = vpop.f32.mrb[0].mxu0
    %1730 = vdwg.mxu0
    %v1732 = vrot.slane %v1726, 6
    %v1734 = vadd.f32 %v1284, %v1732
    %v1735 = vxor.u32 %v1734, 2147483648
    %v1736 = vmul.f32 %v1735, 1.442695
    %v1737 = vpow.pop %v1736
    %v1738 = vadd.f32 %v1737, 1.0
    %v1739 = vrcp.pop %v1738
    %v1740 = vmul.f32 1.0, %v1739
    %v1741 = vtanh.pop %v1734
    %v1743 = vrot.slane %v1677, 6
    %v1745 = vmul.f32 %v1740, %v1743
    %1747 = vrot.lane.b32.xlu0 %v1741, 64
    %v1748 = vpop.permute.xlu0 %1747
    %v1750 = vmul.f32 %v1740, %v1748
    %1752 = vrot.lane.b32.xlu0 %v1750, 32
    %v1753 = vpop.permute.xlu0 %1752
    %v1755 = vadd.f32 %v1745, %v1753
    %v1756 = vtanh.pop %v1755
    %1758 = vrot.lane.b32.xlu0 %v1756, 64
    %v1759 = vpop.permute.xlu0 %1758
    %v1761 = vmul.f32 %v1740, %v1759
    %v1762 = vpack.c.bf16 %v1761, %v1761
    %v1764 = vrot.slane %v1762, 1
    %1765 = vrot.lane.b32.xlu0 %v1764, 32
    %v1766 = vpop.permute.xlu0 %1765
    %v1768 = vsel %vm322, %v1766, 0
    %1770 = vmatprep.subr.bf16.mxu0 0
    %1771 = vmatpush1.bf16.msra.mxu0 %v1300
    %1772 = vmatprep.subr.bf16.mxu0 0
    %1773 = vmatpush1.bf16.msra.mxu0 %v1301
    %1774 = vmatprep.subr.bf16.mxu0 0
    %1775 = vmatpush1.bf16.msra.mxu0 0
    %1776 = vmatprep.subr.bf16.mxu0 0
    %1777 = vmatpush1.bf16.msra.mxu0 0
    %1778 = vmatprep.subr.bf16.mxu0 0
    %1779 = vmatpush1.bf16.msra.mxu0 0
    %1780 = vmatprep.subr.bf16.mxu0 0
    %1781 = vmatpush1.bf16.msra.mxu0 0
    %1782 = vmatprep.subr.bf16.mxu0 0
    %1783 = vmatpush1.bf16.msra.mxu0 0
    %1784 = vmatprep.subr.bf16.mxu0 0
    %1785 = vmatpush1.bf16.msra.mxu0 0
    %1786 = vmatprep.subr.bf16.mxu0 0
    %1787 = vmatpush1.bf16.msra.mxu0 0
    %1788 = vmatprep.subr.bf16.mxu0 0
    %1789 = vmatpush1.bf16.msra.mxu0 0
    %1790 = vmatprep.subr.bf16.mxu0 0
    %1791 = vmatpush1.bf16.msra.mxu0 0
    %1792 = vmatprep.subr.bf16.mxu0 0
    %1793 = vmatpush1.bf16.msra.mxu0 0
    %1794 = vmatprep.subr.bf16.mxu0 0
    %1795 = vmatpush1.bf16.msra.mxu0 0
    %1796 = vmatprep.subr.bf16.mxu0 0
    %1797 = vmatpush1.bf16.msra.mxu0 0
    %1798 = vmatprep.subr.bf16.mxu0 0
    %1799 = vmatpush1.bf16.msra.mxu0 0
    %1800 = vmatprep.subr.bf16.mxu0 0
    %1801 = vmatpush1.bf16.msra.mxu0 0
    %1802 = vmatprep.mubr.bf16.mxu0 0
    %1803 = vmatmul.mubr.bf16.gmra.mrb[0].mxu0 %v1768
    %v1804 = vpop.f32.mrb[0].mxu0
    %v1805 = vadd.f32 0.0, %v1804
    %v1806 = vpop.f32.mrb[0].mxu0
    %v1807 = vpop.f32.mrb[0].mxu0
    %v1808 = vpop.f32.mrb[0].mxu0
    %1809 = vdwg.mxu0
    %v1811 = vrot.slane %v1805, 4
    %v1813 = vadd.f32 %v1284, %v1811
    %v1814 = vxor.u32 %v1813, 2147483648
    %v1815 = vmul.f32 %v1814, 1.442695
    %v1816 = vpow.pop %v1815
    %v1817 = vadd.f32 %v1816, 1.0
    %v1818 = vrcp.pop %v1817
    %v1819 = vmul.f32 1.0, %v1818
    %v1820 = vtanh.pop %v1813
    %v1822 = vrot.slane %v1755, 6
    %v1824 = vmul.f32 %v1819, %v1822
    %1826 = vrot.lane.b32.xlu0 %v1820, 64
    %v1827 = vpop.permute.xlu0 %1826
    %v1829 = vmul.f32 %v1819, %v1827
    %1831 = vrot.lane.b32.xlu0 %v1829, 32
    %v1832 = vpop.permute.xlu0 %1831
    %v1834 = vadd.f32 %v1824, %v1832
    %v1835 = vtanh.pop %v1834
    %1837 = vrot.lane.b32.xlu0 %v1835, 64
    %v1838 = vpop.permute.xlu0 %1837
    %v1840 = vmul.f32 %v1819, %v1838
    %v1841 = vpack.c.bf16 %v1840, %v1840
    %v1843 = vrot.slane %v1841, 2
    %1844 = vrot.lane.b32.xlu0 %v1843, 32
    %v1845 = vpop.permute.xlu0 %1844
    %v1847 = vsel %vm322, %v1845, 0
    %1849 = vmatprep.subr.bf16.mxu0 0
    %1850 = vmatpush1.bf16.msra.mxu0 %v1300
    %1851 = vmatprep.subr.bf16.mxu0 0
    %1852 = vmatpush1.bf16.msra.mxu0 %v1301
    %1853 = vmatprep.subr.bf16.mxu0 0
    %1854 = vmatpush1.bf16.msra.mxu0 0
    %1855 = vmatprep.subr.bf16.mxu0 0
    %1856 = vmatpush1.bf16.msra.mxu0 0
    %1857 = vmatprep.subr.bf16.mxu0 0
    %1858 = vmatpush1.bf16.msra.mxu0 0
    %1859 = vmatprep.subr.bf16.mxu0 0
    %1860 = vmatpush1.bf16.msra.mxu0 0
    %1861 = vmatprep.subr.bf16.mxu0 0
    %1862 = vmatpush1.bf16.msra.mxu0 0
    %1863 = vmatprep.subr.bf16.mxu0 0
    %1864 = vmatpush1.bf16.msra.mxu0 0
    %1865 = vmatprep.subr.bf16.mxu0 0
    %1866 = vmatpush1.bf16.msra.mxu0 0
    %1867 = vmatprep.subr.bf16.mxu0 0
    %1868 = vmatpush1.bf16.msra.mxu0 0
    %1869 = vmatprep.subr.bf16.mxu0 0
    %1870 = vmatpush1.bf16.msra.mxu0 0
    %1871 = vmatprep.subr.bf16.mxu0 0
    %1872 = vmatpush1.bf16.msra.mxu0 0
    %1873 = vmatprep.subr.bf16.mxu0 0
    %1874 = vmatpush1.bf16.msra.mxu0 0
    %1875 = vmatprep.subr.bf16.mxu0 0
    %1876 = vmatpush1.bf16.msra.mxu0 0
    %1877 = vmatprep.subr.bf16.mxu0 0
    %1878 = vmatpush1.bf16.msra.mxu0 0
    %1879 = vmatprep.subr.bf16.mxu0 0
    %1880 = vmatpush1.bf16.msra.mxu0 0
    %1881 = vmatprep.mubr.bf16.mxu0 0
    %1882 = vmatmul.mubr.bf16.gmra.mrb[0].mxu0 %v1847
    %v1883 = vpop.f32.mrb[0].mxu0
    %v1884 = vadd.f32 0.0, %v1883
    %v1885 = vpop.f32.mrb[0].mxu0
    %v1886 = vpop.f32.mrb[0].mxu0
    %v1887 = vpop.f32.mrb[0].mxu0
    %1888 = vdwg.mxu0
    %v1890 = vrot.slane %v1884, 2
    %v1892 = vadd.f32 %v1284, %v1890
    %v1893 = vxor.u32 %v1892, 2147483648
    %v1894 = vmul.f32 %v1893, 1.442695
    %v1895 = vpow.pop %v1894
    %v1896 = vadd.f32 %v1895, 1.0
    %v1897 = vrcp.pop %v1896
    %v1898 = vmul.f32 1.0, %v1897
    %v1899 = vtanh.pop %v1892
    %v1901 = vrot.slane %v1834, 6
    %v1903 = vmul.f32 %v1898, %v1901
    %1905 = vrot.lane.b32.xlu0 %v1899, 64
    %v1906 = vpop.permute.xlu0 %1905
    %v1908 = vmul.f32 %v1898, %v1906
    %1910 = vrot.lane.b32.xlu0 %v1908, 32
    %v1911 = vpop.permute.xlu0 %1910
    %v1913 = vadd.f32 %v1903, %v1911
    %v1914 = vtanh.pop %v1913
    %1916 = vrot.lane.b32.xlu0 %v1914, 64
    %v1917 = vpop.permute.xlu0 %1916
    %v1919 = vmul.f32 %v1898, %v1917
    %v1920 = vxor.u32 %v1286, 2147483648
    %v1921 = vmul.f32 %v1920, 1.442695
    %v1922 = vpow.pop %v1921
    %v1923 = vadd.f32 %v1922, 1.0
    %v1924 = vrcp.pop %v1923
    %v1925 = vmul.f32 1.0, %v1924
    %v1926 = vtanh.pop %v1286
    %v1927 = vmul.f32 %v1925, 0.0
    %1929 = vrot.lane.b32.xlu0 %v1926, 64
    %v1930 = vpop.permute.xlu0 %1929
    %v1932 = vmul.f32 %v1925, %v1930
    %1934 = vrot.lane.b32.xlu0 %v1932, 32
    %v1935 = vpop.permute.xlu0 %1934
    %v1937 = vadd.f32 %v1927, %v1935
    %v1938 = vtanh.pop %v1937
    %1940 = vrot.lane.b32.xlu0 %v1938, 64
    %v1941 = vpop.permute.xlu0 %1940
    %v1943 = vmul.f32 %v1925, %v1941
    %v1944 = vld [vmem:[%s7] sm:$0xf]
    %v1945 = vld [vmem:[%s7 + $0x4] sm:$0xf]
    %v1946 = vld [vmem:[%s7 + $0x8] sm:$0xf]
    %v1947 = vld [vmem:[%s7 + $0xc] sm:$0xf]
    %v1948 = vld [vmem:[%s7 + $0x10] sm:$0xf]
    %v1949 = vld [vmem:[%s7 + $0x14] sm:$0xf]
    %v1950 = vld [vmem:[%s7 + $0x18] sm:$0xf]
    %v1951 = vld [vmem:[%s7 + $0x1c] sm:$0xf]
    %v1952 = vpack.c.bf16 %v1919, %v1919
    %v1953 = vpack.c.bf16 %v1943, %v1943
    %v1955 = vrot.slane %v1953, 3
    %1956 = vrot.lane.b32.xlu0 %v1955, 32
    %v1957 = vpop.permute.xlu0 %1956
    %v1962 = vunpack.c.l.b16 %v1948
    %v1963 = vunpack.c.l.b16 %v1949
    %v1964 = vunpack.c.l.b16 %v1950
    %v1965 = vunpack.c.l.b16 %v1951
    %v1966 = vpack.c.b16 %v1963, %v1962
    %v1967 = vpack.c.b16 %v1965, %v1964
    %v1971 = vsel %vm322, %v1957, 0
    %1973 = vmatprep.subr.bf16.mxu0 0
    %1974 = vmatpush1.bf16.msra.mxu0 %v1966
    %1975 = vmatprep.subr.bf16.mxu0 0
    %1976 = vmatpush1.bf16.msra.mxu0 %v1967
    %1977 = vmatprep.subr.bf16.mxu0 0
    %1978 = vmatpush1.bf16.msra.mxu0 0
    %1979 = vmatprep.subr.bf16.mxu0 0
    %1980 = vmatpush1.bf16.msra.mxu0 0
    %1981 = vmatprep.subr.bf16.mxu0 0
    %1982 = vmatpush1.bf16.msra.mxu0 0
    %1983 = vmatprep.subr.bf16.mxu0 0
    %1984 = vmatpush1.bf16.msra.mxu0 0
    %1985 = vmatprep.subr.bf16.mxu0 0
    %1986 = vmatpush1.bf16.msra.mxu0 0
    %1987 = vmatprep.subr.bf16.mxu0 0
    %1988 = vmatpush1.bf16.msra.mxu0 0
    %1989 = vmatprep.subr.bf16.mxu0 0
    %1990 = vmatpush1.bf16.msra.mxu0 0
    %1991 = vmatprep.subr.bf16.mxu0 0
    %1992 = vmatpush1.bf16.msra.mxu0 0
    %1993 = vmatprep.subr.bf16.mxu0 0
    %1994 = vmatpush1.bf16.msra.mxu0 0
    %1995 = vmatprep.subr.bf16.mxu0 0
    %1996 = vmatpush1.bf16.msra.mxu0 0
    %1997 = vmatprep.subr.bf16.mxu0 0
    %1998 = vmatpush1.bf16.msra.mxu0 0
    %1999 = vmatprep.subr.bf16.mxu0 0
    %2000 = vmatpush1.bf16.msra.mxu0 0
    %2001 = vmatprep.subr.bf16.mxu0 0
    %2002 = vmatpush1.bf16.msra.mxu0 0
    %2003 = vmatprep.subr.bf16.mxu0 0
    %2004 = vmatpush1.bf16.msra.mxu0 0
    %2005 = vmatprep.mubr.bf16.mxu0 0
    %2006 = vmatmul.mubr.bf16.gmra.mrb[0].mxu0 %v1971
    %v2007 = vpop.f32.mrb[0].mxu0
    %v2008 = vadd.f32 0.0, %v2007
    %v2009 = vpop.f32.mrb[0].mxu0
    %v2010 = vpop.f32.mrb[0].mxu0
    %v2011 = vpop.f32.mrb[0].mxu0
    %2012 = vdwg.mxu0
    %v2014 = vrot.slane %v1952, 3
    %2015 = vrot.lane.b32.xlu0 %v2014, 32
    %v2016 = vpop.permute.xlu0 %2015
    %v2021 = vunpack.c.l.b16 %v1944
    %v2022 = vunpack.c.l.b16 %v1945
    %v2023 = vunpack.c.l.b16 %v1946
    %v2024 = vunpack.c.l.b16 %v1947
    %v2025 = vpack.c.b16 %v2022, %v2021
    %v2026 = vpack.c.b16 %v2024, %v2023
    %v2030 = vsel %vm322, %v2016, 0
    %2032 = vmatprep.subr.bf16.mxu0 0
    %2033 = vmatpush1.bf16.msra.mxu0 %v2025
    %2034 = vmatprep.subr.bf16.mxu0 0
    %2035 = vmatpush1.bf16.msra.mxu0 %v2026
    %2036 = vmatprep.subr.bf16.mxu0 0
    %2037 = vmatpush1.bf16.msra.mxu0 0
    %2038 = vmatprep.subr.bf16.mxu0 0
    %2039 = vmatpush1.bf16.msra.mxu0 0
    %2040 = vmatprep.subr.bf16.mxu0 0
    %2041 = vmatpush1.bf16.msra.mxu0 0
    %2042 = vmatprep.subr.bf16.mxu0 0
    %2043 = vmatpush1.bf16.msra.mxu0 0
    %2044 = vmatprep.subr.bf16.mxu0 0
    %2045 = vmatpush1.bf16.msra.mxu0 0
    %2046 = vmatprep.subr.bf16.mxu0 0
    %2047 = vmatpush1.bf16.msra.mxu0 0
    %2048 = vmatprep.subr.bf16.mxu0 0
    %2049 = vmatpush1.bf16.msra.mxu0 0
    %2050 = vmatprep.subr.bf16.mxu0 0
    %2051 = vmatpush1.bf16.msra.mxu0 0
    %2052 = vmatprep.subr.bf16.mxu0 0
    %2053 = vmatpush1.bf16.msra.mxu0 0
    %2054 = vmatprep.subr.bf16.mxu0 0
    %2055 = vmatpush1.bf16.msra.mxu0 0
    %2056 = vmatprep.subr.bf16.mxu0 0
    %2057 = vmatpush1.bf16.msra.mxu0 0
    %2058 = vmatprep.subr.bf16.mxu0 0
    %2059 = vmatpush1.bf16.msra.mxu0 0
    %2060 = vmatprep.subr.bf16.mxu0 0
    %2061 = vmatpush1.bf16.msra.mxu0 0
    %2062 = vmatprep.subr.bf16.mxu0 0
    %2063 = vmatpush1.bf16.msra.mxu0 0
    %2064 = vmatprep.mubr.bf16.mxu0 0
    %2065 = vmatmul.mubr.bf16.gmra.mrb[0].mxu0 %v2030
    %v2066 = vpop.f32.mrb[0].mxu0
    %v2067 = vadd.f32 %v2008, %v2066
    %v2068 = vpop.f32.mrb[0].mxu0
    %v2069 = vpop.f32.mrb[0].mxu0
    %v2070 = vpop.f32.mrb[0].mxu0
    %2071 = vdwg.mxu0
    %v2072 = vld [vmem:[%s8] sm:$0x1]
    %v2074 = vlaneseq
    %v2075 = vshrl.u32 %v2074, 7
    %v2076 = vsub.s32 0, %v2075
    %v2077 = vrot.slane %v2072, %v2076
    %v2079 = vadd.f32 %v2067, %v2077
    %vm2080 = vcmask 74752
    %2081 = vst.msk [vmem:[#allocation3] sm:$0x3] %vm2080, %v2079
    // Predicated region
    $region38: #{fused_forward.1} parent=1 // pred_check
      _
    $region39: #{fused_forward.1} parent=1 // pred_check_branch
      %2083 = sbr.rel (0) target = $region41
    $region40: #{fused_forward.1} parent=1 // pred_region
      %s2085 = ssub.s32 32, 32
      %2086 = vsyncadd [#allocation4], %s2085
      %s2088 = sshll.u32 [#allocation3], 4
      %s2089 = int_to_ptr.vmem [resolvable:$true] %s2088
      %2091 = dma.vmem_to_hbm [thread:$0]  %s2089, 32, %s9, [#allocation4]
    $region41: #{fused_forward.1} parent=1 // pred_fallthru
      _
    // Predicated region
    $region42: #{fused_forward.1} parent=1 // pred_check
      _
    $region43: #{fused_forward.1} parent=1 // pred_check_branch
      %2093 = sbr.rel (0) target = $region45
    $region44: #{fused_forward.1} parent=1 // pred_region
      %2094 = dma.done [#allocation4], 32
    $region45: #{fused_forward.1} parent=1 // pred_fallthru
      _
    %2095 = vsyncpa [#allocation4], 1

</llo_original>
